<compile_context>
chip_gen: v7x
topology: tpu7x:2x2x1
jax: 0.10.0
libtpu: 0.0.40
codegen_flags: <defaults>
</compile_context>

<pallas_src>
import math

import jax
import jax.numpy as jnp
from jax.experimental import pallas as pl
from jax.experimental.pallas import tpu as pltpu


def _cbam_kernel_factory(C, Cr, H, W, HW, K):
    PAD = (K - 1) // 2
    P0 = PAD * W + PAD                    # max |flat offset| of any conv tap
    HALO = ((P0 + 127) // 128) * 128      # zero halo length (>= P0)
    inv_hw = 1.0 / float(HW)
    inv_c = 1.0 / float(C)

    def kernel(wsv_ref, w1t_ref, w2_ref, x_ref, o_ref):
        # wsv_ref: VMEM (2, K*K) f32  spatial conv weights; row 0 -> avg map,
        #                             row 1 -> max map, flattened [di][dj]
        # w1t_ref: VMEM (C, Cr)  f32  fc1 weight, pre-transposed on the host
        # w2_ref : VMEM (C, Cr)  f32  fc2 weight
        # x_ref / o_ref: VMEM (1, C, HW), input dtype (natural, un-padded)
        x = x_ref[0]                                                    # (C, HW)

        # ---------------- channel attention ----------------
        avg_p = jnp.sum(x, axis=1, dtype=jnp.float32, keepdims=True) * inv_hw  # (C,1)
        max_p = jnp.max(x, axis=1, keepdims=True).astype(jnp.float32)          # (C,1)

        # fc1 (C -> Cr) as broadcast-mul + sublane-reduce (exact f32, VPU/XLU,
        # no MXU).  fc2 has no bias and is linear, so
        # fc2(relu(h_avg)) + fc2(relu(h_max)) == fc2(relu(h_avg) + relu(h_max)):
        # one fc2 pass serves both pooled paths.
        def fc1(p):                                     # p: (C, 1) f32
            return jnp.maximum(
                jnp.sum(w1t_ref[...] * p, axis=0, keepdims=True), 0.0)  # (1, Cr)

        h = fc1(avg_p) + fc1(max_p)                                     # (1, Cr)
        ca = jax.nn.sigmoid(
            jnp.sum(w2_ref[...] * h, axis=1, keepdims=True))            # (C, 1)

        # Channel gating written straight into the output buffer: no (C, HW)
        # x1 scratch stays live across the spatial stage.
        o_ref[0] = (x * ca.astype(x.dtype)).astype(o_ref.dtype)

        # ---------------- spatial attention ----------------
        x1 = o_ref[0]                                                   # (C, HW)
        avg_m = jnp.sum(x1, axis=0, dtype=jnp.float32, keepdims=True) * inv_c
        max_m = jnp.max(x1, axis=0, keepdims=True).astype(jnp.float32)
        maps = jnp.concatenate([avg_m, max_m], axis=0)                  # (2, HW)

        zpad = jnp.zeros((2, HALO), jnp.float32)
        padded = jnp.concatenate([zpad, maps, zpad], axis=1)            # (2, HW+2*HALO)

        lane = jax.lax.broadcasted_iota(jnp.int32, (1, HW), 1)
        w_pos = lane % W
        col_ok = [(w_pos >= PAD - dj) & (w_pos < W + PAD - dj) for dj in range(K)]

        w_all = wsv_ref[...]                                            # (2, K*K)

        # KxK cross-correlation over the flattened maps.  Vertically
        # out-of-range taps read exact zeros from the halos (no row masks);
        # horizontally out-of-range taps are masked by col_ok (skipped for the
        # all-true dj == PAD column).  Both maps are processed together on two
        # sublanes; 4 independent accumulator chains keep the VALU slots busy.
        accs = [jnp.zeros((2, HW), jnp.float32) for _ in range(4)]
        for di in range(K):
            for dj in range(K):
                t = di * K + dj
                s = HALO + (di - PAD) * W + (dj - PAD)
                tap = w_all[:, t:t + 1] * padded[:, s:s + HW]           # (2, HW)
                if dj != PAD:
                    tap = jnp.where(col_ok[dj], tap, 0.0)
                accs[t % 4] = accs[t % 4] + tap
        acc = (accs[0] + accs[1]) + (accs[2] + accs[3])                 # (2, HW)
        sa = jax.nn.sigmoid(acc[0:1, :] + acc[1:2, :])                  # (1, HW)

        o_ref[0] = o_ref[0] * sa.astype(o_ref.dtype)

    return kernel


def _vmem_limit_bytes(slab_bytes):
    try:
        cap = int(pltpu.get_tpu_info().vmem_capacity_bytes)
    except Exception:  # conservative fallback if the query is unavailable
        cap = 128 * 2**20
    # Double-buffered input + output slabs plus live full-slab values and
    # compiler scratch headroom; capped at 75% of physical VMEM so the
    # pipeline stays double-buffered (~48 MiB on v7x, ~96 MiB on v5e/v6e).
    need = 6 * slab_bytes + (4 << 20)
    return int(min(cap * 3 // 4, max(32 << 20, need)))


def cbam_forward(x, fc1_weight, fc2_weight, spatial_weight):
    """CBAM forward.

    x: (B, C, H, W); fc1_weight: (C//16, C, 1, 1); fc2_weight: (C, C//16, 1, 1);
    spatial_weight: (1, 2, K, K) (K = 7 by default, zero padding (K-1)//2).
    """
    B, C, H, W = x.shape
    Cr = fc1_weight.shape[0]
    K = spatial_weight.shape[-1]
    HW = H * W
    assert Cr >= 1, "in_planes must be >= 16 (fc1 reduces C -> C // 16)"

    # Natural (B, C, H*W) layout: the reshape is metadata-only, so x is read
    # from HBM exactly once and the output written exactly once.
    x_flat = x.reshape(B, C, HW)

    w1t = fc1_weight.reshape(Cr, C).astype(jnp.float32).T        # (C, Cr)
    w2 = fc2_weight.reshape(C, Cr).astype(jnp.float32)           # (C, Cr)
    wsv = spatial_weight.astype(jnp.float32).reshape(2, K * K)   # rows: [avg, max]

    kernel = _cbam_kernel_factory(C, Cr, H, W, HW, K)

    slab = C * HW * x.dtype.itemsize
    vmem_limit = _vmem_limit_bytes(slab)

    # TODO(synk): two-phase fallback (pooled/gate kernel + HW-tiled rescale
    # kernel) for slabs that exceed the VMEM budget or for B == 1 / odd B on
    # v7x, where a grid of (B,) under-utilizes the two TensorCores.
    out_flat = pl.pallas_call(
        kernel,
        out_shape=jax.ShapeDtypeStruct((B, C, HW), x.dtype),
        grid=(B,),
        in_specs=[
            pl.BlockSpec((2, K * K), lambda b: (0, 0)),          # spatial conv w
            pl.BlockSpec((C, Cr), lambda b: (0, 0)),             # fc1^T
            pl.BlockSpec((C, Cr), lambda b: (0, 0)),             # fc2
            pl.BlockSpec((1, C, HW), lambda b: (b, 0, 0)),       # x slab
        ],
        out_specs=pl.BlockSpec((1, C, HW), lambda b: (b, 0, 0)),
        compiler_params=pltpu.CompilerParams(
            dimension_semantics=("parallel",),
            vmem_limit_bytes=vmem_limit),
    )(wsv, w1t, w2, x_flat)

    return out_flat.reshape(B, C, H, W)


def cbam_reference(x, fc1_weight, fc2_weight, spatial_weight):
    """Pure-JAX reference mirroring the PyTorch CBAM forward."""
    B, C, H, W = x.shape
    Cr = fc1_weight.shape[0]
    K = spatial_weight.shape[-1]
    PAD = (K - 1) // 2
    hp = jax.lax.Precision.HIGHEST
    w1 = fc1_weight.reshape(Cr, C).astype(jnp.float32)
    w2 = fc2_weight.reshape(C, Cr).astype(jnp.float32)

    xf = x.astype(jnp.float32)
    avg = xf.mean(axis=(2, 3))                                      # (B, C)
    mx = xf.max(axis=(2, 3))                                        # (B, C)

    def mlp(p):
        h = jnp.maximum(jnp.einsum("rc,bc->br", w1, p, precision=hp), 0.0)
        return jnp.einsum("cr,br->bc", w2, h, precision=hp)

    ca = jax.nn.sigmoid(mlp(avg) + mlp(mx))                         # (B, C)
    x1 = x * ca.astype(x.dtype)[:, :, None, None]

    x1f = x1.astype(jnp.float32)
    s_in = jnp.concatenate([x1f.mean(axis=1, keepdims=True),
                            x1f.max(axis=1, keepdims=True)], axis=1)  # (B,2,H,W)
    s = jax.lax.conv_general_dilated(
        s_in, spatial_weight.astype(jnp.float32), window_strides=(1, 1),
        padding=((PAD, PAD), (PAD, PAD)),
        dimension_numbers=("NCHW", "OIHW", "NCHW"), precision=hp)
    sa = jax.nn.sigmoid(s)                                          # (B,1,H,W)
    return x1 * sa.astype(x1.dtype)


if __name__ == "__main__":
    B, C = 2, 32                 # fc1 reduces C -> C // 16 = 2 (as in the module)
    K = 7                        # SpatialAttention default kernel_size
    Cr = C // 16

    key = jax.random.PRNGKey(0)
    kx, kx2, k1, k2, k3 = jax.random.split(key, 5)

    # Deterministic PyTorch-style weight init (uniform +-1/sqrt(fan_in), no bias).
    w_fc1 = jax.random.uniform(k1, (Cr, C, 1, 1), jnp.float32,
                               minval=-1.0 / math.sqrt(C), maxval=1.0 / math.sqrt(C))
    w_fc2 = jax.random.uniform(k2, (C, Cr, 1, 1), jnp.float32,
                               minval=-1.0 / math.sqrt(Cr), maxval=1.0 / math.sqrt(Cr))
    w_sp = jax.random.uniform(k3, (1, 2, K, K), jnp.float32,
                              minval=-1.0 / math.sqrt(2 * K * K),
                              maxval=1.0 / math.sqrt(2 * K * K))

    fwd = jax.jit(cbam_forward)

    # Shape 1: H*W = 256 (lane-multiple spatial size).
    x = jax.random.normal(kx, (B, C, 16, 16), dtype=jnp.float32)
    out = jax.block_until_ready(fwd(x, w_fc1, w_fc2, w_sp))
    ref = cbam_reference(x, w_fc1, w_fc2, w_sp)
    assert out.shape == x.shape and out.dtype == x.dtype
    assert jnp.allclose(out, ref, atol=1e-4, rtol=1e-4), "CBAM mismatch (16x16)"

    # Shape 2: H*W = 49 exercises the natural, non-lane-multiple path
    # (previously handled with a host-side pad/slice pair).
    x2 = jax.random.normal(kx2, (B, C, 7, 7), dtype=jnp.float32)
    out2 = jax.block_until_ready(fwd(x2, w_fc1, w_fc2, w_sp))
    ref2 = cbam_reference(x2, w_fc1, w_fc2, w_sp)
    assert out2.shape == x2.shape and out2.dtype == x2.dtype
    assert jnp.allclose(out2, ref2, atol=1e-4, rtol=1e-4), "CBAM mismatch (7x7)"

    print("KERNEL_OK")
</pallas_src>

<mosaic_0001>
module attributes {stable_mosaic.version = 11 : i64} {
  func.func @kernel(%arg0: i32, %arg1: memref<2x49xf32, #tpu.memory_space<vmem>>, %arg2: memref<32x2xf32, #tpu.memory_space<vmem>>, %arg3: memref<32x2xf32, #tpu.memory_space<vmem>>, %arg4: memref<1x32x256xf32, #tpu.memory_space<vmem>>, %arg5: memref<1x32x256xf32, #tpu.memory_space<vmem>>) attributes {dimension_semantics = [#tpu.dimension_semantics<parallel>], iteration_bounds = array<i64: 2>, scalar_prefetch = 0 : i64, scratch_operands = 0 : i64, tpu.core_type = #tpu.core_type<tc>, window_params = [{pipeline_mode = #tpu.pipeline_mode<synchronous>, transform_indices = @transform_0, window_bounds = array<i64: 2, 49>}, {pipeline_mode = #tpu.pipeline_mode<synchronous>, transform_indices = @transform_1, window_bounds = array<i64: 32, 2>}, {pipeline_mode = #tpu.pipeline_mode<synchronous>, transform_indices = @transform_2, window_bounds = array<i64: 32, 2>}, {transform_indices = @transform_3, window_bounds = array<i64: 1, 32, 256>}, {transform_indices = @transform_4, window_bounds = array<i64: 1, 32, 256>}]} {
    %c0 = arith.constant 0 : index
    %c0_0 = arith.constant 0 : index
    %c0_1 = arith.constant 0 : index
    %0 = vector.load %arg4[%c0, %c0_0, %c0_1] : memref<1x32x256xf32, #tpu.memory_space<vmem>>, vector<1x32x256xf32>
    %1 = vector.shape_cast %0 : vector<1x32x256xf32> to vector<32x256xf32>
    %cst = arith.constant dense<0.000000e+00> : vector<32xf32>
    %2 = vector.multi_reduction <add>, %1, %cst [1] : vector<32x256xf32> to vector<32xf32>
    %3 = vector.shape_cast %2 : vector<32xf32> to vector<32x1xf32>
    %cst_2 = arith.constant 3.906250e-03 : f32
    %4 = vector.broadcast %cst_2 : f32 to vector<32x1xf32>
    %5 = arith.mulf %3, %4 : vector<32x1xf32>
    %cst_3 = arith.constant dense<0xFF800000> : vector<32xf32>
    %6 = vector.multi_reduction <maximumf>, %1, %cst_3 [1] : vector<32x256xf32> to vector<32xf32>
    %7 = vector.shape_cast %6 : vector<32xf32> to vector<32x1xf32>
    %c0_4 = arith.constant 0 : index
    %c0_5 = arith.constant 0 : index
    %8 = vector.load %arg2[%c0_4, %c0_5] : memref<32x2xf32, #tpu.memory_space<vmem>>, vector<32x2xf32>
    %9 = vector.broadcast %5 : vector<32x1xf32> to vector<32x2xf32>
    %10 = arith.mulf %8, %9 : vector<32x2xf32>
    %cst_6 = arith.constant dense<0.000000e+00> : vector<2xf32>
    %11 = vector.multi_reduction <add>, %10, %cst_6 [0] : vector<32x2xf32> to vector<2xf32>
    %12 = vector.shape_cast %11 : vector<2xf32> to vector<1x2xf32>
    %cst_7 = arith.constant 0.000000e+00 : f32
    %13 = vector.broadcast %cst_7 : f32 to vector<1x2xf32>
    %14 = arith.maximumf %12, %13 : vector<1x2xf32>
    %c0_8 = arith.constant 0 : index
    %c0_9 = arith.constant 0 : index
    %15 = vector.load %arg2[%c0_8, %c0_9] : memref<32x2xf32, #tpu.memory_space<vmem>>, vector<32x2xf32>
    %16 = vector.broadcast %7 : vector<32x1xf32> to vector<32x2xf32>
    %17 = arith.mulf %15, %16 : vector<32x2xf32>
    %cst_10 = arith.constant dense<0.000000e+00> : vector<2xf32>
    %18 = vector.multi_reduction <add>, %17, %cst_10 [0] : vector<32x2xf32> to vector<2xf32>
    %19 = vector.shape_cast %18 : vector<2xf32> to vector<1x2xf32>
    %cst_11 = arith.constant 0.000000e+00 : f32
    %20 = vector.broadcast %cst_11 : f32 to vector<1x2xf32>
    %21 = arith.maximumf %19, %20 : vector<1x2xf32>
    %22 = arith.addf %14, %21 : vector<1x2xf32>
    %c0_12 = arith.constant 0 : index
    %c0_13 = arith.constant 0 : index
    %23 = vector.load %arg3[%c0_12, %c0_13] : memref<32x2xf32, #tpu.memory_space<vmem>>, vector<32x2xf32>
    %24 = vector.broadcast %22 : vector<1x2xf32> to vector<32x2xf32>
    %25 = arith.mulf %23, %24 : vector<32x2xf32>
    %cst_14 = arith.constant dense<0.000000e+00> : vector<32xf32>
    %26 = vector.multi_reduction <add>, %25, %cst_14 [1] : vector<32x2xf32> to vector<32xf32>
    %27 = vector.shape_cast %26 : vector<32xf32> to vector<32x1xf32>
    %28 = arith.negf %27 : vector<32x1xf32>
    %29 = math.exp %28 : vector<32x1xf32>
    %cst_15 = arith.constant 1.000000e+00 : f32
    %30 = vector.broadcast %cst_15 : f32 to vector<32x1xf32>
    %31 = arith.addf %30, %29 : vector<32x1xf32>
    %32 = arith.divf %30, %31 : vector<32x1xf32>
    %33 = vector.broadcast %32 : vector<32x1xf32> to vector<32x256xf32>
    %34 = arith.mulf %1, %33 : vector<32x256xf32>
    %c0_16 = arith.constant 0 : index
    %c0_17 = arith.constant 0 : index
    %c0_18 = arith.constant 0 : index
    %35 = vector.load %arg5[%c0_16, %c0_17, %c0_18] : memref<1x32x256xf32, #tpu.memory_space<vmem>>, vector<1x32x256xf32>
    %36 = vector.shape_cast %35 : vector<1x32x256xf32> to vector<32x256xf32>
    %37 = vector.shape_cast %34 : vector<32x256xf32> to vector<1x32x256xf32>
    tpu.vector_store %arg5[%c0_16, %c0_17, %c0_18], %37 {strides = array<i32>} : memref<1x32x256xf32, #tpu.memory_space<vmem>>, vector<1x32x256xf32>,
    %c0_19 = arith.constant 0 : index
    %c0_20 = arith.constant 0 : index
    %c0_21 = arith.constant 0 : index
    %38 = vector.load %arg5[%c0_19, %c0_20, %c0_21] : memref<1x32x256xf32, #tpu.memory_space<vmem>>, vector<1x32x256xf32>
    %39 = vector.shape_cast %38 : vector<1x32x256xf32> to vector<32x256xf32>
    %cst_22 = arith.constant dense<0.000000e+00> : vector<256xf32>
    %40 = vector.multi_reduction <add>, %39, %cst_22 [0] : vector<32x256xf32> to vector<256xf32>
    %41 = vector.shape_cast %40 : vector<256xf32> to vector<1x256xf32>
    %cst_23 = arith.constant 3.125000e-02 : f32
    %42 = vector.broadcast %cst_23 : f32 to vector<1x256xf32>
    %43 = arith.mulf %41, %42 : vector<1x256xf32>
    %cst_24 = arith.constant dense<0xFF800000> : vector<256xf32>
    %44 = vector.multi_reduction <maximumf>, %39, %cst_24 [0] : vector<32x256xf32> to vector<256xf32>
    %45 = vector.shape_cast %44 : vector<256xf32> to vector<1x256xf32>
    %46 = tpu.concatenate %43, %45 in 0 : vector<1x256xf32>, vector<1x256xf32> -> vector<2x256xf32>
    %cst_25 = arith.constant 0.000000e+00 : f32
    %47 = vector.broadcast %cst_25 : f32 to vector<2x128xf32>
    %48 = tpu.concatenate %47, %46, %47 in 1 : vector<2x128xf32>, vector<2x256xf32>, vector<2x128xf32> -> vector<2x512xf32>
    %49 = tpu.iota {dimensions = array<i32: 1>} : vector<1x256xi32>
    %c16_i32 = arith.constant 16 : i32
    %c0_i32 = arith.constant 0 : i32
    %50 = arith.cmpi eq, %c16_i32, %c0_i32 : i32
    %c1_i32 = arith.constant 1 : i32
    %51 = arith.select %50, %c1_i32, %c16_i32 : i32
    %52 = vector.broadcast %51 : i32 to vector<1x256xi32>
    %53 = arith.remsi %49, %52 : vector<1x256xi32>
    %c0_i32_26 = arith.constant 0 : i32
    %54 = vector.broadcast %c0_i32_26 : i32 to vector<1x256xi32>
    %55 = arith.cmpi ne, %53, %54 : vector<1x256xi32>
    %c0_i32_27 = arith.constant 0 : i32
    %56 = vector.broadcast %c0_i32_27 : i32 to vector<1x256xi32>
    %57 = arith.cmpi slt, %53, %56 : vector<1x256xi32>
    %c0_i32_28 = arith.constant 0 : i32
    %58 = arith.cmpi slt, %51, %c0_i32_28 : i32
    %59 = vector.broadcast %58 : i1 to vector<1x256xi1>
    %60 = vector.broadcast %59 : vector<1x256xi1> to vector<1x256xi1>
    %61 = arith.xori %57, %60 : vector<1x256xi1>
    %62 = arith.andi %61, %55 : vector<1x256xi1>
    %63 = vector.broadcast %51 : i32 to vector<1x256xi32>
    %64 = arith.addi %53, %63 : vector<1x256xi32>
    %65 = arith.select %62, %64, %53 : vector<1x256xi1>, vector<1x256xi32>
    %c3_i32 = arith.constant 3 : i32
    %66 = vector.broadcast %c3_i32 : i32 to vector<1x256xi32>
    %67 = arith.cmpi sge, %65, %66 : vector<1x256xi32>
    %c19_i32 = arith.constant 19 : i32
    %68 = vector.broadcast %c19_i32 : i32 to vector<1x256xi32>
    %69 = arith.cmpi slt, %65, %68 : vector<1x256xi32>
    %70 = arith.andi %67, %69 : vector<1x256xi1>
    %c2_i32 = arith.constant 2 : i32
    %71 = vector.broadcast %c2_i32 : i32 to vector<1x256xi32>
    %72 = arith.cmpi sge, %65, %71 : vector<1x256xi32>
    %c18_i32 = arith.constant 18 : i32
    %73 = vector.broadcast %c18_i32 : i32 to vector<1x256xi32>
    %74 = arith.cmpi slt, %65, %73 : vector<1x256xi32>
    %75 = arith.andi %72, %74 : vector<1x256xi1>
    %c1_i32_29 = arith.constant 1 : i32
    %76 = vector.broadcast %c1_i32_29 : i32 to vector<1x256xi32>
    %77 = arith.cmpi sge, %65, %76 : vector<1x256xi32>
    %c17_i32 = arith.constant 17 : i32
    %78 = vector.broadcast %c17_i32 : i32 to vector<1x256xi32>
    %79 = arith.cmpi slt, %65, %78 : vector<1x256xi32>
    %80 = arith.andi %77, %79 : vector<1x256xi1>
    %c-1_i32 = arith.constant -1 : i32
    %81 = vector.broadcast %c-1_i32 : i32 to vector<1x256xi32>
    %82 = arith.cmpi sge, %65, %81 : vector<1x256xi32>
    %c15_i32 = arith.constant 15 : i32
    %83 = vector.broadcast %c15_i32 : i32 to vector<1x256xi32>
    %84 = arith.cmpi slt, %65, %83 : vector<1x256xi32>
    %85 = arith.andi %82, %84 : vector<1x256xi1>
    %c-2_i32 = arith.constant -2 : i32
    %86 = vector.broadcast %c-2_i32 : i32 to vector<1x256xi32>
    %87 = arith.cmpi sge, %65, %86 : vector<1x256xi32>
    %c14_i32 = arith.constant 14 : i32
    %88 = vector.broadcast %c14_i32 : i32 to vector<1x256xi32>
    %89 = arith.cmpi slt, %65, %88 : vector<1x256xi32>
    %90 = arith.andi %87, %89 : vector<1x256xi1>
    %c-3_i32 = arith.constant -3 : i32
    %91 = vector.broadcast %c-3_i32 : i32 to vector<1x256xi32>
    %92 = arith.cmpi sge, %65, %91 : vector<1x256xi32>
    %c13_i32 = arith.constant 13 : i32
    %93 = vector.broadcast %c13_i32 : i32 to vector<1x256xi32>
    %94 = arith.cmpi slt, %65, %93 : vector<1x256xi32>
    %95 = arith.andi %92, %94 : vector<1x256xi1>
    %c0_30 = arith.constant 0 : index
    %c0_31 = arith.constant 0 : index
    %96 = vector.load %arg1[%c0_30, %c0_31] : memref<2x49xf32, #tpu.memory_space<vmem>>, vector<2x49xf32>
    %cst_32 = arith.constant 0.000000e+00 : f32
    %97 = vector.broadcast %cst_32 : f32 to vector<2x256xf32>
    %cst_33 = arith.constant 0.000000e+00 : f32
    %98 = vector.broadcast %cst_33 : f32 to vector<2x256xf32>
    %cst_34 = arith.constant 0.000000e+00 : f32
    %99 = vector.broadcast %cst_34 : f32 to vector<2x256xf32>
    %cst_35 = arith.constant 0.000000e+00 : f32
    %100 = vector.broadcast %cst_35 : f32 to vector<2x256xf32>
    %101 = vector.extract_strided_slice %96 {offsets = [0, 0], sizes = [2, 1], strides = [1, 1]} : vector<2x49xf32> to vector<2x1xf32>
    %102 = vector.extract_strided_slice %48 {offsets = [0, 77], sizes = [2, 256], strides = [1, 1]} : vector<2x512xf32> to vector<2x256xf32>
    %103 = vector.broadcast %101 : vector<2x1xf32> to vector<2x256xf32>
    %104 = arith.mulf %103, %102 : vector<2x256xf32>
    %cst_36 = arith.constant 0.000000e+00 : f32
    %105 = vector.shape_cast %70 : vector<1x256xi1> to vector<1x256xi1>
    %106 = vector.broadcast %105 : vector<1x256xi1> to vector<2x256xi1>
    %107 = vector.broadcast %cst_36 : f32 to vector<2x256xf32>
    %108 = arith.select %106, %104, %107 : vector<2x256xi1>, vector<2x256xf32>
    %109 = arith.addf %97, %108 : vector<2x256xf32>
    %110 = vector.extract_strided_slice %96 {offsets = [0, 1], sizes = [2, 1], strides = [1, 1]} : vector<2x49xf32> to vector<2x1xf32>
    %111 = vector.extract_strided_slice %48 {offsets = [0, 78], sizes = [2, 256], strides = [1, 1]} : vector<2x512xf32> to vector<2x256xf32>
    %112 = vector.broadcast %110 : vector<2x1xf32> to vector<2x256xf32>
    %113 = arith.mulf %112, %111 : vector<2x256xf32>
    %cst_37 = arith.constant 0.000000e+00 : f32
    %114 = vector.shape_cast %75 : vector<1x256xi1> to vector<1x256xi1>
    %115 = vector.broadcast %114 : vector<1x256xi1> to vector<2x256xi1>
    %116 = vector.broadcast %cst_37 : f32 to vector<2x256xf32>
    %117 = arith.select %115, %113, %116 : vector<2x256xi1>, vector<2x256xf32>
    %118 = arith.addf %98, %117 : vector<2x256xf32>
    %119 = vector.extract_strided_slice %96 {offsets = [0, 2], sizes = [2, 1], strides = [1, 1]} : vector<2x49xf32> to vector<2x1xf32>
    %120 = vector.extract_strided_slice %48 {offsets = [0, 79], sizes = [2, 256], strides = [1, 1]} : vector<2x512xf32> to vector<2x256xf32>
    %121 = vector.broadcast %119 : vector<2x1xf32> to vector<2x256xf32>
    %122 = arith.mulf %121, %120 : vector<2x256xf32>
    %cst_38 = arith.constant 0.000000e+00 : f32
    %123 = vector.shape_cast %80 : vector<1x256xi1> to vector<1x256xi1>
    %124 = vector.broadcast %123 : vector<1x256xi1> to vector<2x256xi1>
    %125 = vector.broadcast %cst_38 : f32 to vector<2x256xf32>
    %126 = arith.select %124, %122, %125 : vector<2x256xi1>, vector<2x256xf32>
    %127 = arith.addf %99, %126 : vector<2x256xf32>
    %128 = vector.extract_strided_slice %96 {offsets = [0, 3], sizes = [2, 1], strides = [1, 1]} : vector<2x49xf32> to vector<2x1xf32>
    %129 = vector.extract_strided_slice %48 {offsets = [0, 80], sizes = [2, 256], strides = [1, 1]} : vector<2x512xf32> to vector<2x256xf32>
    %130 = vector.broadcast %128 : vector<2x1xf32> to vector<2x256xf32>
    %131 = arith.mulf %130, %129 : vector<2x256xf32>
    %132 = arith.addf %100, %131 : vector<2x256xf32>
    %133 = vector.extract_strided_slice %96 {offsets = [0, 4], sizes = [2, 1], strides = [1, 1]} : vector<2x49xf32> to vector<2x1xf32>
    %134 = vector.extract_strided_slice %48 {offsets = [0, 81], sizes = [2, 256], strides = [1, 1]} : vector<2x512xf32> to vector<2x256xf32>
    %135 = vector.broadcast %133 : vector<2x1xf32> to vector<2x256xf32>
    %136 = arith.mulf %135, %134 : vector<2x256xf32>
    %cst_39 = arith.constant 0.000000e+00 : f32
    %137 = vector.shape_cast %85 : vector<1x256xi1> to vector<1x256xi1>
    %138 = vector.broadcast %137 : vector<1x256xi1> to vector<2x256xi1>
    %139 = vector.broadcast %cst_39 : f32 to vector<2x256xf32>
    %140 = arith.select %138, %136, %139 : vector<2x256xi1>, vector<2x256xf32>
    %141 = arith.addf %109, %140 : vector<2x256xf32>
    %142 = vector.extract_strided_slice %96 {offsets = [0, 5], sizes = [2, 1], strides = [1, 1]} : vector<2x49xf32> to vector<2x1xf32>
    %143 = vector.extract_strided_slice %48 {offsets = [0, 82], sizes = [2, 256], strides = [1, 1]} : vector<2x512xf32> to vector<2x256xf32>
    %144 = vector.broadcast %142 : vector<2x1xf32> to vector<2x256xf32>
    %145 = arith.mulf %144, %143 : vector<2x256xf32>
    %cst_40 = arith.constant 0.000000e+00 : f32
    %146 = vector.shape_cast %90 : vector<1x256xi1> to vector<1x256xi1>
    %147 = vector.broadcast %146 : vector<1x256xi1> to vector<2x256xi1>
    %148 = vector.broadcast %cst_40 : f32 to vector<2x256xf32>
    %149 = arith.select %147, %145, %148 : vector<2x256xi1>, vector<2x256xf32>
    %150 = arith.addf %118, %149 : vector<2x256xf32>
    %151 = vector.extract_strided_slice %96 {offsets = [0, 6], sizes = [2, 1], strides = [1, 1]} : vector<2x49xf32> to vector<2x1xf32>
    %152 = vector.extract_strided_slice %48 {offsets = [0, 83], sizes = [2, 256], strides = [1, 1]} : vector<2x512xf32> to vector<2x256xf32>
    %153 = vector.broadcast %151 : vector<2x1xf32> to vector<2x256xf32>
    %154 = arith.mulf %153, %152 : vector<2x256xf32>
    %cst_41 = arith.constant 0.000000e+00 : f32
    %155 = vector.shape_cast %95 : vector<1x256xi1> to vector<1x256xi1>
    %156 = vector.broadcast %155 : vector<1x256xi1> to vector<2x256xi1>
    %157 = vector.broadcast %cst_41 : f32 to vector<2x256xf32>
    %158 = arith.select %156, %154, %157 : vector<2x256xi1>, vector<2x256xf32>
    %159 = arith.addf %127, %158 : vector<2x256xf32>
    %160 = vector.extract_strided_slice %96 {offsets = [0, 7], sizes = [2, 1], strides = [1, 1]} : vector<2x49xf32> to vector<2x1xf32>
    %161 = vector.extract_strided_slice %48 {offsets = [0, 93], sizes = [2, 256], strides = [1, 1]} : vector<2x512xf32> to vector<2x256xf32>
    %162 = vector.broadcast %160 : vector<2x1xf32> to vector<2x256xf32>
    %163 = arith.mulf %162, %161 : vector<2x256xf32>
    %cst_42 = arith.constant 0.000000e+00 : f32
    %164 = vector.shape_cast %70 : vector<1x256xi1> to vector<1x256xi1>
    %165 = vector.broadcast %164 : vector<1x256xi1> to vector<2x256xi1>
    %166 = vector.broadcast %cst_42 : f32 to vector<2x256xf32>
    %167 = arith.select %165, %163, %166 : vector<2x256xi1>, vector<2x256xf32>
    %168 = arith.addf %132, %167 : vector<2x256xf32>
    %169 = vector.extract_strided_slice %96 {offsets = [0, 8], sizes = [2, 1], strides = [1, 1]} : vector<2x49xf32> to vector<2x1xf32>
    %170 = vector.extract_strided_slice %48 {offsets = [0, 94], sizes = [2, 256], strides = [1, 1]} : vector<2x512xf32> to vector<2x256xf32>
    %171 = vector.broadcast %169 : vector<2x1xf32> to vector<2x256xf32>
    %172 = arith.mulf %171, %170 : vector<2x256xf32>
    %cst_43 = arith.constant 0.000000e+00 : f32
    %173 = vector.shape_cast %75 : vector<1x256xi1> to vector<1x256xi1>
    %174 = vector.broadcast %173 : vector<1x256xi1> to vector<2x256xi1>
    %175 = vector.broadcast %cst_43 : f32 to vector<2x256xf32>
    %176 = arith.select %174, %172, %175 : vector<2x256xi1>, vector<2x256xf32>
    %177 = arith.addf %141, %176 : vector<2x256xf32>
    %178 = vector.extract_strided_slice %96 {offsets = [0, 9], sizes = [2, 1], strides = [1, 1]} : vector<2x49xf32> to vector<2x1xf32>
    %179 = vector.extract_strided_slice %48 {offsets = [0, 95], sizes = [2, 256], strides = [1, 1]} : vector<2x512xf32> to vector<2x256xf32>
    %180 = vector.broadcast %178 : vector<2x1xf32> to vector<2x256xf32>
    %181 = arith.mulf %180, %179 : vector<2x256xf32>
    %cst_44 = arith.constant 0.000000e+00 : f32
    %182 = vector.shape_cast %80 : vector<1x256xi1> to vector<1x256xi1>
    %183 = vector.broadcast %182 : vector<1x256xi1> to vector<2x256xi1>
    %184 = vector.broadcast %cst_44 : f32 to vector<2x256xf32>
    %185 = arith.select %183, %181, %184 : vector<2x256xi1>, vector<2x256xf32>
    %186 = arith.addf %150, %185 : vector<2x256xf32>
    %187 = vector.extract_strided_slice %96 {offsets = [0, 10], sizes = [2, 1], strides = [1, 1]} : vector<2x49xf32> to vector<2x1xf32>
    %188 = vector.extract_strided_slice %48 {offsets = [0, 96], sizes = [2, 256], strides = [1, 1]} : vector<2x512xf32> to vector<2x256xf32>
    %189 = vector.broadcast %187 : vector<2x1xf32> to vector<2x256xf32>
    %190 = arith.mulf %189, %188 : vector<2x256xf32>
    %191 = arith.addf %159, %190 : vector<2x256xf32>
    %192 = vector.extract_strided_slice %96 {offsets = [0, 11], sizes = [2, 1], strides = [1, 1]} : vector<2x49xf32> to vector<2x1xf32>
    %193 = vector.extract_strided_slice %48 {offsets = [0, 97], sizes = [2, 256], strides = [1, 1]} : vector<2x512xf32> to vector<2x256xf32>
    %194 = vector.broadcast %192 : vector<2x1xf32> to vector<2x256xf32>
    %195 = arith.mulf %194, %193 : vector<2x256xf32>
    %cst_45 = arith.constant 0.000000e+00 : f32
    %196 = vector.shape_cast %85 : vector<1x256xi1> to vector<1x256xi1>
    %197 = vector.broadcast %196 : vector<1x256xi1> to vector<2x256xi1>
    %198 = vector.broadcast %cst_45 : f32 to vector<2x256xf32>
    %199 = arith.select %197, %195, %198 : vector<2x256xi1>, vector<2x256xf32>
    %200 = arith.addf %168, %199 : vector<2x256xf32>
    %201 = vector.extract_strided_slice %96 {offsets = [0, 12], sizes = [2, 1], strides = [1, 1]} : vector<2x49xf32> to vector<2x1xf32>
    %202 = vector.extract_strided_slice %48 {offsets = [0, 98], sizes = [2, 256], strides = [1, 1]} : vector<2x512xf32> to vector<2x256xf32>
    %203 = vector.broadcast %201 : vector<2x1xf32> to vector<2x256xf32>
    %204 = arith.mulf %203, %202 : vector<2x256xf32>
    %cst_46 = arith.constant 0.000000e+00 : f32
    %205 = vector.shape_cast %90 : vector<1x256xi1> to vector<1x256xi1>
    %206 = vector.broadcast %205 : vector<1x256xi1> to vector<2x256xi1>
    %207 = vector.broadcast %cst_46 : f32 to vector<2x256xf32>
    %208 = arith.select %206, %204, %207 : vector<2x256xi1>, vector<2x256xf32>
    %209 = arith.addf %177, %208 : vector<2x256xf32>
    %210 = vector.extract_strided_slice %96 {offsets = [0, 13], sizes = [2, 1], strides = [1, 1]} : vector<2x49xf32> to vector<2x1xf32>
    %211 = vector.extract_strided_slice %48 {offsets = [0, 99], sizes = [2, 256], strides = [1, 1]} : vector<2x512xf32> to vector<2x256xf32>
    %212 = vector.broadcast %210 : vector<2x1xf32> to vector<2x256xf32>
    %213 = arith.mulf %212, %211 : vector<2x256xf32>
    %cst_47 = arith.constant 0.000000e+00 : f32
    %214 = vector.shape_cast %95 : vector<1x256xi1> to vector<1x256xi1>
    %215 = vector.broadcast %214 : vector<1x256xi1> to vector<2x256xi1>
    %216 = vector.broadcast %cst_47 : f32 to vector<2x256xf32>
    %217 = arith.select %215, %213, %216 : vector<2x256xi1>, vector<2x256xf32>
    %218 = arith.addf %186, %217 : vector<2x256xf32>
    %219 = vector.extract_strided_slice %96 {offsets = [0, 14], sizes = [2, 1], strides = [1, 1]} : vector<2x49xf32> to vector<2x1xf32>
    %220 = vector.extract_strided_slice %48 {offsets = [0, 109], sizes = [2, 256], strides = [1, 1]} : vector<2x512xf32> to vector<2x256xf32>
    %221 = vector.broadcast %219 : vector<2x1xf32> to vector<2x256xf32>
    %222 = arith.mulf %221, %220 : vector<2x256xf32>
    %cst_48 = arith.constant 0.000000e+00 : f32
    %223 = vector.shape_cast %70 : vector<1x256xi1> to vector<1x256xi1>
    %224 = vector.broadcast %223 : vector<1x256xi1> to vector<2x256xi1>
    %225 = vector.broadcast %cst_48 : f32 to vector<2x256xf32>
    %226 = arith.select %224, %222, %225 : vector<2x256xi1>, vector<2x256xf32>
    %227 = arith.addf %191, %226 : vector<2x256xf32>
    %228 = vector.extract_strided_slice %96 {offsets = [0, 15], sizes = [2, 1], strides = [1, 1]} : vector<2x49xf32> to vector<2x1xf32>
    %229 = vector.extract_strided_slice %48 {offsets = [0, 110], sizes = [2, 256], strides = [1, 1]} : vector<2x512xf32> to vector<2x256xf32>
    %230 = vector.broadcast %228 : vector<2x1xf32> to vector<2x256xf32>
    %231 = arith.mulf %230, %229 : vector<2x256xf32>
    %cst_49 = arith.constant 0.000000e+00 : f32
    %232 = vector.shape_cast %75 : vector<1x256xi1> to vector<1x256xi1>
    %233 = vector.broadcast %232 : vector<1x256xi1> to vector<2x256xi1>
    %234 = vector.broadcast %cst_49 : f32 to vector<2x256xf32>
    %235 = arith.select %233, %231, %234 : vector<2x256xi1>, vector<2x256xf32>
    %236 = arith.addf %200, %235 : vector<2x256xf32>
    %237 = vector.extract_strided_slice %96 {offsets = [0, 16], sizes = [2, 1], strides = [1, 1]} : vector<2x49xf32> to vector<2x1xf32>
    %238 = vector.extract_strided_slice %48 {offsets = [0, 111], sizes = [2, 256], strides = [1, 1]} : vector<2x512xf32> to vector<2x256xf32>
    %239 = vector.broadcast %237 : vector<2x1xf32> to vector<2x256xf32>
    %240 = arith.mulf %239, %238 : vector<2x256xf32>
    %cst_50 = arith.constant 0.000000e+00 : f32
    %241 = vector.shape_cast %80 : vector<1x256xi1> to vector<1x256xi1>
    %242 = vector.broadcast %241 : vector<1x256xi1> to vector<2x256xi1>
    %243 = vector.broadcast %cst_50 : f32 to vector<2x256xf32>
    %244 = arith.select %242, %240, %243 : vector<2x256xi1>, vector<2x256xf32>
    %245 = arith.addf %209, %244 : vector<2x256xf32>
    %246 = vector.extract_strided_slice %96 {offsets = [0, 17], sizes = [2, 1], strides = [1, 1]} : vector<2x49xf32> to vector<2x1xf32>
    %247 = vector.extract_strided_slice %48 {offsets = [0, 112], sizes = [2, 256], strides = [1, 1]} : vector<2x512xf32> to vector<2x256xf32>
    %248 = vector.broadcast %246 : vector<2x1xf32> to vector<2x256xf32>
    %249 = arith.mulf %248, %247 : vector<2x256xf32>
    %250 = arith.addf %218, %249 : vector<2x256xf32>
    %251 = vector.extract_strided_slice %96 {offsets = [0, 18], sizes = [2, 1], strides = [1, 1]} : vector<2x49xf32> to vector<2x1xf32>
    %252 = vector.extract_strided_slice %48 {offsets = [0, 113], sizes = [2, 256], strides = [1, 1]} : vector<2x512xf32> to vector<2x256xf32>
    %253 = vector.broadcast %251 : vector<2x1xf32> to vector<2x256xf32>
    %254 = arith.mulf %253, %252 : vector<2x256xf32>
    %cst_51 = arith.constant 0.000000e+00 : f32
    %255 = vector.shape_cast %85 : vector<1x256xi1> to vector<1x256xi1>
    %256 = vector.broadcast %255 : vector<1x256xi1> to vector<2x256xi1>
    %257 = vector.broadcast %cst_51 : f32 to vector<2x256xf32>
    %258 = arith.select %256, %254, %257 : vector<2x256xi1>, vector<2x256xf32>
    %259 = arith.addf %227, %258 : vector<2x256xf32>
    %260 = vector.extract_strided_slice %96 {offsets = [0, 19], sizes = [2, 1], strides = [1, 1]} : vector<2x49xf32> to vector<2x1xf32>
    %261 = vector.extract_strided_slice %48 {offsets = [0, 114], sizes = [2, 256], strides = [1, 1]} : vector<2x512xf32> to vector<2x256xf32>
    %262 = vector.broadcast %260 : vector<2x1xf32> to vector<2x256xf32>
    %263 = arith.mulf %262, %261 : vector<2x256xf32>
    %cst_52 = arith.constant 0.000000e+00 : f32
    %264 = vector.shape_cast %90 : vector<1x256xi1> to vector<1x256xi1>
    %265 = vector.broadcast %264 : vector<1x256xi1> to vector<2x256xi1>
    %266 = vector.broadcast %cst_52 : f32 to vector<2x256xf32>
    %267 = arith.select %265, %263, %266 : vector<2x256xi1>, vector<2x256xf32>
    %268 = arith.addf %236, %267 : vector<2x256xf32>
    %269 = vector.extract_strided_slice %96 {offsets = [0, 20], sizes = [2, 1], strides = [1, 1]} : vector<2x49xf32> to vector<2x1xf32>
    %270 = vector.extract_strided_slice %48 {offsets = [0, 115], sizes = [2, 256], strides = [1, 1]} : vector<2x512xf32> to vector<2x256xf32>
    %271 = vector.broadcast %269 : vector<2x1xf32> to vector<2x256xf32>
    %272 = arith.mulf %271, %270 : vector<2x256xf32>
    %cst_53 = arith.constant 0.000000e+00 : f32
    %273 = vector.shape_cast %95 : vector<1x256xi1> to vector<1x256xi1>
    %274 = vector.broadcast %273 : vector<1x256xi1> to vector<2x256xi1>
    %275 = vector.broadcast %cst_53 : f32 to vector<2x256xf32>
    %276 = arith.select %274, %272, %275 : vector<2x256xi1>, vector<2x256xf32>
    %277 = arith.addf %245, %276 : vector<2x256xf32>
    %278 = vector.extract_strided_slice %96 {offsets = [0, 21], sizes = [2, 1], strides = [1, 1]} : vector<2x49xf32> to vector<2x1xf32>
    %279 = vector.extract_strided_slice %48 {offsets = [0, 125], sizes = [2, 256], strides = [1, 1]} : vector<2x512xf32> to vector<2x256xf32>
    %280 = vector.broadcast %278 : vector<2x1xf32> to vector<2x256xf32>
    %281 = arith.mulf %280, %279 : vector<2x256xf32>
    %cst_54 = arith.constant 0.000000e+00 : f32
    %282 = vector.shape_cast %70 : vector<1x256xi1> to vector<1x256xi1>
    %283 = vector.broadcast %282 : vector<1x256xi1> to vector<2x256xi1>
    %284 = vector.broadcast %cst_54 : f32 to vector<2x256xf32>
    %285 = arith.select %283, %281, %284 : vector<2x256xi1>, vector<2x256xf32>
    %286 = arith.addf %250, %285 : vector<2x256xf32>
    %287 = vector.extract_strided_slice %96 {offsets = [0, 22], sizes = [2, 1], strides = [1, 1]} : vector<2x49xf32> to vector<2x1xf32>
    %288 = vector.extract_strided_slice %48 {offsets = [0, 126], sizes = [2, 256], strides = [1, 1]} : vector<2x512xf32> to vector<2x256xf32>
    %289 = vector.broadcast %287 : vector<2x1xf32> to vector<2x256xf32>
    %290 = arith.mulf %289, %288 : vector<2x256xf32>
    %cst_55 = arith.constant 0.000000e+00 : f32
    %291 = vector.shape_cast %75 : vector<1x256xi1> to vector<1x256xi1>
    %292 = vector.broadcast %291 : vector<1x256xi1> to vector<2x256xi1>
    %293 = vector.broadcast %cst_55 : f32 to vector<2x256xf32>
    %294 = arith.select %292, %290, %293 : vector<2x256xi1>, vector<2x256xf32>
    %295 = arith.addf %259, %294 : vector<2x256xf32>
    %296 = vector.extract_strided_slice %96 {offsets = [0, 23], sizes = [2, 1], strides = [1, 1]} : vector<2x49xf32> to vector<2x1xf32>
    %297 = vector.extract_strided_slice %48 {offsets = [0, 127], sizes = [2, 256], strides = [1, 1]} : vector<2x512xf32> to vector<2x256xf32>
    %298 = vector.broadcast %296 : vector<2x1xf32> to vector<2x256xf32>
    %299 = arith.mulf %298, %297 : vector<2x256xf32>
    %cst_56 = arith.constant 0.000000e+00 : f32
    %300 = vector.shape_cast %80 : vector<1x256xi1> to vector<1x256xi1>
    %301 = vector.broadcast %300 : vector<1x256xi1> to vector<2x256xi1>
    %302 = vector.broadcast %cst_56 : f32 to vector<2x256xf32>
    %303 = arith.select %301, %299, %302 : vector<2x256xi1>, vector<2x256xf32>
    %304 = arith.addf %268, %303 : vector<2x256xf32>
    %305 = vector.extract_strided_slice %96 {offsets = [0, 24], sizes = [2, 1], strides = [1, 1]} : vector<2x49xf32> to vector<2x1xf32>
    %306 = vector.extract_strided_slice %48 {offsets = [0, 128], sizes = [2, 256], strides = [1, 1]} : vector<2x512xf32> to vector<2x256xf32>
    %307 = vector.broadcast %305 : vector<2x1xf32> to vector<2x256xf32>
    %308 = arith.mulf %307, %306 : vector<2x256xf32>
    %309 = arith.addf %277, %308 : vector<2x256xf32>
    %310 = vector.extract_strided_slice %96 {offsets = [0, 25], sizes = [2, 1], strides = [1, 1]} : vector<2x49xf32> to vector<2x1xf32>
    %311 = vector.extract_strided_slice %48 {offsets = [0, 129], sizes = [2, 256], strides = [1, 1]} : vector<2x512xf32> to vector<2x256xf32>
    %312 = vector.broadcast %310 : vector<2x1xf32> to vector<2x256xf32>
    %313 = arith.mulf %312, %311 : vector<2x256xf32>
    %cst_57 = arith.constant 0.000000e+00 : f32
    %314 = vector.shape_cast %85 : vector<1x256xi1> to vector<1x256xi1>
    %315 = vector.broadcast %314 : vector<1x256xi1> to vector<2x256xi1>
    %316 = vector.broadcast %cst_57 : f32 to vector<2x256xf32>
    %317 = arith.select %315, %313, %316 : vector<2x256xi1>, vector<2x256xf32>
    %318 = arith.addf %286, %317 : vector<2x256xf32>
    %319 = vector.extract_strided_slice %96 {offsets = [0, 26], sizes = [2, 1], strides = [1, 1]} : vector<2x49xf32> to vector<2x1xf32>
    %320 = vector.extract_strided_slice %48 {offsets = [0, 130], sizes = [2, 256], strides = [1, 1]} : vector<2x512xf32> to vector<2x256xf32>
    %321 = vector.broadcast %319 : vector<2x1xf32> to vector<2x256xf32>
    %322 = arith.mulf %321, %320 : vector<2x256xf32>
    %cst_58 = arith.constant 0.000000e+00 : f32
    %323 = vector.shape_cast %90 : vector<1x256xi1> to vector<1x256xi1>
    %324 = vector.broadcast %323 : vector<1x256xi1> to vector<2x256xi1>
    %325 = vector.broadcast %cst_58 : f32 to vector<2x256xf32>
    %326 = arith.select %324, %322, %325 : vector<2x256xi1>, vector<2x256xf32>
    %327 = arith.addf %295, %326 : vector<2x256xf32>
    %328 = vector.extract_strided_slice %96 {offsets = [0, 27], sizes = [2, 1], strides = [1, 1]} : vector<2x49xf32> to vector<2x1xf32>
    %329 = vector.extract_strided_slice %48 {offsets = [0, 131], sizes = [2, 256], strides = [1, 1]} : vector<2x512xf32> to vector<2x256xf32>
    %330 = vector.broadcast %328 : vector<2x1xf32> to vector<2x256xf32>
    %331 = arith.mulf %330, %329 : vector<2x256xf32>
    %cst_59 = arith.constant 0.000000e+00 : f32
    %332 = vector.shape_cast %95 : vector<1x256xi1> to vector<1x256xi1>
    %333 = vector.broadcast %332 : vector<1x256xi1> to vector<2x256xi1>
    %334 = vector.broadcast %cst_59 : f32 to vector<2x256xf32>
    %335 = arith.select %333, %331, %334 : vector<2x256xi1>, vector<2x256xf32>
    %336 = arith.addf %304, %335 : vector<2x256xf32>
    %337 = vector.extract_strided_slice %96 {offsets = [0, 28], sizes = [2, 1], strides = [1, 1]} : vector<2x49xf32> to vector<2x1xf32>
    %338 = vector.extract_strided_slice %48 {offsets = [0, 141], sizes = [2, 256], strides = [1, 1]} : vector<2x512xf32> to vector<2x256xf32>
    %339 = vector.broadcast %337 : vector<2x1xf32> to vector<2x256xf32>
    %340 = arith.mulf %339, %338 : vector<2x256xf32>
    %cst_60 = arith.constant 0.000000e+00 : f32
    %341 = vector.shape_cast %70 : vector<1x256xi1> to vector<1x256xi1>
    %342 = vector.broadcast %341 : vector<1x256xi1> to vector<2x256xi1>
    %343 = vector.broadcast %cst_60 : f32 to vector<2x256xf32>
    %344 = arith.select %342, %340, %343 : vector<2x256xi1>, vector<2x256xf32>
    %345 = arith.addf %309, %344 : vector<2x256xf32>
    %346 = vector.extract_strided_slice %96 {offsets = [0, 29], sizes = [2, 1], strides = [1, 1]} : vector<2x49xf32> to vector<2x1xf32>
    %347 = vector.extract_strided_slice %48 {offsets = [0, 142], sizes = [2, 256], strides = [1, 1]} : vector<2x512xf32> to vector<2x256xf32>
    %348 = vector.broadcast %346 : vector<2x1xf32> to vector<2x256xf32>
    %349 = arith.mulf %348, %347 : vector<2x256xf32>
    %cst_61 = arith.constant 0.000000e+00 : f32
    %350 = vector.shape_cast %75 : vector<1x256xi1> to vector<1x256xi1>
    %351 = vector.broadcast %350 : vector<1x256xi1> to vector<2x256xi1>
    %352 = vector.broadcast %cst_61 : f32 to vector<2x256xf32>
    %353 = arith.select %351, %349, %352 : vector<2x256xi1>, vector<2x256xf32>
    %354 = arith.addf %318, %353 : vector<2x256xf32>
    %355 = vector.extract_strided_slice %96 {offsets = [0, 30], sizes = [2, 1], strides = [1, 1]} : vector<2x49xf32> to vector<2x1xf32>
    %356 = vector.extract_strided_slice %48 {offsets = [0, 143], sizes = [2, 256], strides = [1, 1]} : vector<2x512xf32> to vector<2x256xf32>
    %357 = vector.broadcast %355 : vector<2x1xf32> to vector<2x256xf32>
    %358 = arith.mulf %357, %356 : vector<2x256xf32>
    %cst_62 = arith.constant 0.000000e+00 : f32
    %359 = vector.shape_cast %80 : vector<1x256xi1> to vector<1x256xi1>
    %360 = vector.broadcast %359 : vector<1x256xi1> to vector<2x256xi1>
    %361 = vector.broadcast %cst_62 : f32 to vector<2x256xf32>
    %362 = arith.select %360, %358, %361 : vector<2x256xi1>, vector<2x256xf32>
    %363 = arith.addf %327, %362 : vector<2x256xf32>
    %364 = vector.extract_strided_slice %96 {offsets = [0, 31], sizes = [2, 1], strides = [1, 1]} : vector<2x49xf32> to vector<2x1xf32>
    %365 = vector.extract_strided_slice %48 {offsets = [0, 144], sizes = [2, 256], strides = [1, 1]} : vector<2x512xf32> to vector<2x256xf32>
    %366 = vector.broadcast %364 : vector<2x1xf32> to vector<2x256xf32>
    %367 = arith.mulf %366, %365 : vector<2x256xf32>
    %368 = arith.addf %336, %367 : vector<2x256xf32>
    %369 = vector.extract_strided_slice %96 {offsets = [0, 32], sizes = [2, 1], strides = [1, 1]} : vector<2x49xf32> to vector<2x1xf32>
    %370 = vector.extract_strided_slice %48 {offsets = [0, 145], sizes = [2, 256], strides = [1, 1]} : vector<2x512xf32> to vector<2x256xf32>
    %371 = vector.broadcast %369 : vector<2x1xf32> to vector<2x256xf32>
    %372 = arith.mulf %371, %370 : vector<2x256xf32>
    %cst_63 = arith.constant 0.000000e+00 : f32
    %373 = vector.shape_cast %85 : vector<1x256xi1> to vector<1x256xi1>
    %374 = vector.broadcast %373 : vector<1x256xi1> to vector<2x256xi1>
    %375 = vector.broadcast %cst_63 : f32 to vector<2x256xf32>
    %376 = arith.select %374, %372, %375 : vector<2x256xi1>, vector<2x256xf32>
    %377 = arith.addf %345, %376 : vector<2x256xf32>
    %378 = vector.extract_strided_slice %96 {offsets = [0, 33], sizes = [2, 1], strides = [1, 1]} : vector<2x49xf32> to vector<2x1xf32>
    %379 = vector.extract_strided_slice %48 {offsets = [0, 146], sizes = [2, 256], strides = [1, 1]} : vector<2x512xf32> to vector<2x256xf32>
    %380 = vector.broadcast %378 : vector<2x1xf32> to vector<2x256xf32>
    %381 = arith.mulf %380, %379 : vector<2x256xf32>
    %cst_64 = arith.constant 0.000000e+00 : f32
    %382 = vector.shape_cast %90 : vector<1x256xi1> to vector<1x256xi1>
    %383 = vector.broadcast %382 : vector<1x256xi1> to vector<2x256xi1>
    %384 = vector.broadcast %cst_64 : f32 to vector<2x256xf32>
    %385 = arith.select %383, %381, %384 : vector<2x256xi1>, vector<2x256xf32>
    %386 = arith.addf %354, %385 : vector<2x256xf32>
    %387 = vector.extract_strided_slice %96 {offsets = [0, 34], sizes = [2, 1], strides = [1, 1]} : vector<2x49xf32> to vector<2x1xf32>
    %388 = vector.extract_strided_slice %48 {offsets = [0, 147], sizes = [2, 256], strides = [1, 1]} : vector<2x512xf32> to vector<2x256xf32>
    %389 = vector.broadcast %387 : vector<2x1xf32> to vector<2x256xf32>
    %390 = arith.mulf %389, %388 : vector<2x256xf32>
    %cst_65 = arith.constant 0.000000e+00 : f32
    %391 = vector.shape_cast %95 : vector<1x256xi1> to vector<1x256xi1>
    %392 = vector.broadcast %391 : vector<1x256xi1> to vector<2x256xi1>
    %393 = vector.broadcast %cst_65 : f32 to vector<2x256xf32>
    %394 = arith.select %392, %390, %393 : vector<2x256xi1>, vector<2x256xf32>
    %395 = arith.addf %363, %394 : vector<2x256xf32>
    %396 = vector.extract_strided_slice %96 {offsets = [0, 35], sizes = [2, 1], strides = [1, 1]} : vector<2x49xf32> to vector<2x1xf32>
    %397 = vector.extract_strided_slice %48 {offsets = [0, 157], sizes = [2, 256], strides = [1, 1]} : vector<2x512xf32> to vector<2x256xf32>
    %398 = vector.broadcast %396 : vector<2x1xf32> to vector<2x256xf32>
    %399 = arith.mulf %398, %397 : vector<2x256xf32>
    %cst_66 = arith.constant 0.000000e+00 : f32
    %400 = vector.shape_cast %70 : vector<1x256xi1> to vector<1x256xi1>
    %401 = vector.broadcast %400 : vector<1x256xi1> to vector<2x256xi1>
    %402 = vector.broadcast %cst_66 : f32 to vector<2x256xf32>
    %403 = arith.select %401, %399, %402 : vector<2x256xi1>, vector<2x256xf32>
    %404 = arith.addf %368, %403 : vector<2x256xf32>
    %405 = vector.extract_strided_slice %96 {offsets = [0, 36], sizes = [2, 1], strides = [1, 1]} : vector<2x49xf32> to vector<2x1xf32>
    %406 = vector.extract_strided_slice %48 {offsets = [0, 158], sizes = [2, 256], strides = [1, 1]} : vector<2x512xf32> to vector<2x256xf32>
    %407 = vector.broadcast %405 : vector<2x1xf32> to vector<2x256xf32>
    %408 = arith.mulf %407, %406 : vector<2x256xf32>
    %cst_67 = arith.constant 0.000000e+00 : f32
    %409 = vector.shape_cast %75 : vector<1x256xi1> to vector<1x256xi1>
    %410 = vector.broadcast %409 : vector<1x256xi1> to vector<2x256xi1>
    %411 = vector.broadcast %cst_67 : f32 to vector<2x256xf32>
    %412 = arith.select %410, %408, %411 : vector<2x256xi1>, vector<2x256xf32>
    %413 = arith.addf %377, %412 : vector<2x256xf32>
    %414 = vector.extract_strided_slice %96 {offsets = [0, 37], sizes = [2, 1], strides = [1, 1]} : vector<2x49xf32> to vector<2x1xf32>
    %415 = vector.extract_strided_slice %48 {offsets = [0, 159], sizes = [2, 256], strides = [1, 1]} : vector<2x512xf32> to vector<2x256xf32>
    %416 = vector.broadcast %414 : vector<2x1xf32> to vector<2x256xf32>
    %417 = arith.mulf %416, %415 : vector<2x256xf32>
    %cst_68 = arith.constant 0.000000e+00 : f32
    %418 = vector.shape_cast %80 : vector<1x256xi1> to vector<1x256xi1>
    %419 = vector.broadcast %418 : vector<1x256xi1> to vector<2x256xi1>
    %420 = vector.broadcast %cst_68 : f32 to vector<2x256xf32>
    %421 = arith.select %419, %417, %420 : vector<2x256xi1>, vector<2x256xf32>
    %422 = arith.addf %386, %421 : vector<2x256xf32>
    %423 = vector.extract_strided_slice %96 {offsets = [0, 38], sizes = [2, 1], strides = [1, 1]} : vector<2x49xf32> to vector<2x1xf32>
    %424 = vector.extract_strided_slice %48 {offsets = [0, 160], sizes = [2, 256], strides = [1, 1]} : vector<2x512xf32> to vector<2x256xf32>
    %425 = vector.broadcast %423 : vector<2x1xf32> to vector<2x256xf32>
    %426 = arith.mulf %425, %424 : vector<2x256xf32>
    %427 = arith.addf %395, %426 : vector<2x256xf32>
    %428 = vector.extract_strided_slice %96 {offsets = [0, 39], sizes = [2, 1], strides = [1, 1]} : vector<2x49xf32> to vector<2x1xf32>
    %429 = vector.extract_strided_slice %48 {offsets = [0, 161], sizes = [2, 256], strides = [1, 1]} : vector<2x512xf32> to vector<2x256xf32>
    %430 = vector.broadcast %428 : vector<2x1xf32> to vector<2x256xf32>
    %431 = arith.mulf %430, %429 : vector<2x256xf32>
    %cst_69 = arith.constant 0.000000e+00 : f32
    %432 = vector.shape_cast %85 : vector<1x256xi1> to vector<1x256xi1>
    %433 = vector.broadcast %432 : vector<1x256xi1> to vector<2x256xi1>
    %434 = vector.broadcast %cst_69 : f32 to vector<2x256xf32>
    %435 = arith.select %433, %431, %434 : vector<2x256xi1>, vector<2x256xf32>
    %436 = arith.addf %404, %435 : vector<2x256xf32>
    %437 = vector.extract_strided_slice %96 {offsets = [0, 40], sizes = [2, 1], strides = [1, 1]} : vector<2x49xf32> to vector<2x1xf32>
    %438 = vector.extract_strided_slice %48 {offsets = [0, 162], sizes = [2, 256], strides = [1, 1]} : vector<2x512xf32> to vector<2x256xf32>
    %439 = vector.broadcast %437 : vector<2x1xf32> to vector<2x256xf32>
    %440 = arith.mulf %439, %438 : vector<2x256xf32>
    %cst_70 = arith.constant 0.000000e+00 : f32
    %441 = vector.shape_cast %90 : vector<1x256xi1> to vector<1x256xi1>
    %442 = vector.broadcast %441 : vector<1x256xi1> to vector<2x256xi1>
    %443 = vector.broadcast %cst_70 : f32 to vector<2x256xf32>
    %444 = arith.select %442, %440, %443 : vector<2x256xi1>, vector<2x256xf32>
    %445 = arith.addf %413, %444 : vector<2x256xf32>
    %446 = vector.extract_strided_slice %96 {offsets = [0, 41], sizes = [2, 1], strides = [1, 1]} : vector<2x49xf32> to vector<2x1xf32>
    %447 = vector.extract_strided_slice %48 {offsets = [0, 163], sizes = [2, 256], strides = [1, 1]} : vector<2x512xf32> to vector<2x256xf32>
    %448 = vector.broadcast %446 : vector<2x1xf32> to vector<2x256xf32>
    %449 = arith.mulf %448, %447 : vector<2x256xf32>
    %cst_71 = arith.constant 0.000000e+00 : f32
    %450 = vector.shape_cast %95 : vector<1x256xi1> to vector<1x256xi1>
    %451 = vector.broadcast %450 : vector<1x256xi1> to vector<2x256xi1>
    %452 = vector.broadcast %cst_71 : f32 to vector<2x256xf32>
    %453 = arith.select %451, %449, %452 : vector<2x256xi1>, vector<2x256xf32>
    %454 = arith.addf %422, %453 : vector<2x256xf32>
    %455 = vector.extract_strided_slice %96 {offsets = [0, 42], sizes = [2, 1], strides = [1, 1]} : vector<2x49xf32> to vector<2x1xf32>
    %456 = vector.extract_strided_slice %48 {offsets = [0, 173], sizes = [2, 256], strides = [1, 1]} : vector<2x512xf32> to vector<2x256xf32>
    %457 = vector.broadcast %455 : vector<2x1xf32> to vector<2x256xf32>
    %458 = arith.mulf %457, %456 : vector<2x256xf32>
    %cst_72 = arith.constant 0.000000e+00 : f32
    %459 = vector.shape_cast %70 : vector<1x256xi1> to vector<1x256xi1>
    %460 = vector.broadcast %459 : vector<1x256xi1> to vector<2x256xi1>
    %461 = vector.broadcast %cst_72 : f32 to vector<2x256xf32>
    %462 = arith.select %460, %458, %461 : vector<2x256xi1>, vector<2x256xf32>
    %463 = arith.addf %427, %462 : vector<2x256xf32>
    %464 = vector.extract_strided_slice %96 {offsets = [0, 43], sizes = [2, 1], strides = [1, 1]} : vector<2x49xf32> to vector<2x1xf32>
    %465 = vector.extract_strided_slice %48 {offsets = [0, 174], sizes = [2, 256], strides = [1, 1]} : vector<2x512xf32> to vector<2x256xf32>
    %466 = vector.broadcast %464 : vector<2x1xf32> to vector<2x256xf32>
    %467 = arith.mulf %466, %465 : vector<2x256xf32>
    %cst_73 = arith.constant 0.000000e+00 : f32
    %468 = vector.shape_cast %75 : vector<1x256xi1> to vector<1x256xi1>
    %469 = vector.broadcast %468 : vector<1x256xi1> to vector<2x256xi1>
    %470 = vector.broadcast %cst_73 : f32 to vector<2x256xf32>
    %471 = arith.select %469, %467, %470 : vector<2x256xi1>, vector<2x256xf32>
    %472 = arith.addf %436, %471 : vector<2x256xf32>
    %473 = vector.extract_strided_slice %96 {offsets = [0, 44], sizes = [2, 1], strides = [1, 1]} : vector<2x49xf32> to vector<2x1xf32>
    %474 = vector.extract_strided_slice %48 {offsets = [0, 175], sizes = [2, 256], strides = [1, 1]} : vector<2x512xf32> to vector<2x256xf32>
    %475 = vector.broadcast %473 : vector<2x1xf32> to vector<2x256xf32>
    %476 = arith.mulf %475, %474 : vector<2x256xf32>
    %cst_74 = arith.constant 0.000000e+00 : f32
    %477 = vector.shape_cast %80 : vector<1x256xi1> to vector<1x256xi1>
    %478 = vector.broadcast %477 : vector<1x256xi1> to vector<2x256xi1>
    %479 = vector.broadcast %cst_74 : f32 to vector<2x256xf32>
    %480 = arith.select %478, %476, %479 : vector<2x256xi1>, vector<2x256xf32>
    %481 = arith.addf %445, %480 : vector<2x256xf32>
    %482 = vector.extract_strided_slice %96 {offsets = [0, 45], sizes = [2, 1], strides = [1, 1]} : vector<2x49xf32> to vector<2x1xf32>
    %483 = vector.extract_strided_slice %48 {offsets = [0, 176], sizes = [2, 256], strides = [1, 1]} : vector<2x512xf32> to vector<2x256xf32>
    %484 = vector.broadcast %482 : vector<2x1xf32> to vector<2x256xf32>
    %485 = arith.mulf %484, %483 : vector<2x256xf32>
    %486 = arith.addf %454, %485 : vector<2x256xf32>
    %487 = vector.extract_strided_slice %96 {offsets = [0, 46], sizes = [2, 1], strides = [1, 1]} : vector<2x49xf32> to vector<2x1xf32>
    %488 = vector.extract_strided_slice %48 {offsets = [0, 177], sizes = [2, 256], strides = [1, 1]} : vector<2x512xf32> to vector<2x256xf32>
    %489 = vector.broadcast %487 : vector<2x1xf32> to vector<2x256xf32>
    %490 = arith.mulf %489, %488 : vector<2x256xf32>
    %cst_75 = arith.constant 0.000000e+00 : f32
    %491 = vector.shape_cast %85 : vector<1x256xi1> to vector<1x256xi1>
    %492 = vector.broadcast %491 : vector<1x256xi1> to vector<2x256xi1>
    %493 = vector.broadcast %cst_75 : f32 to vector<2x256xf32>
    %494 = arith.select %492, %490, %493 : vector<2x256xi1>, vector<2x256xf32>
    %495 = arith.addf %463, %494 : vector<2x256xf32>
    %496 = vector.extract_strided_slice %96 {offsets = [0, 47], sizes = [2, 1], strides = [1, 1]} : vector<2x49xf32> to vector<2x1xf32>
    %497 = vector.extract_strided_slice %48 {offsets = [0, 178], sizes = [2, 256], strides = [1, 1]} : vector<2x512xf32> to vector<2x256xf32>
    %498 = vector.broadcast %496 : vector<2x1xf32> to vector<2x256xf32>
    %499 = arith.mulf %498, %497 : vector<2x256xf32>
    %cst_76 = arith.constant 0.000000e+00 : f32
    %500 = vector.shape_cast %90 : vector<1x256xi1> to vector<1x256xi1>
    %501 = vector.broadcast %500 : vector<1x256xi1> to vector<2x256xi1>
    %502 = vector.broadcast %cst_76 : f32 to vector<2x256xf32>
    %503 = arith.select %501, %499, %502 : vector<2x256xi1>, vector<2x256xf32>
    %504 = arith.addf %472, %503 : vector<2x256xf32>
    %505 = vector.extract_strided_slice %96 {offsets = [0, 48], sizes = [2, 1], strides = [1, 1]} : vector<2x49xf32> to vector<2x1xf32>
    %506 = vector.extract_strided_slice %48 {offsets = [0, 179], sizes = [2, 256], strides = [1, 1]} : vector<2x512xf32> to vector<2x256xf32>
    %507 = vector.broadcast %505 : vector<2x1xf32> to vector<2x256xf32>
    %508 = arith.mulf %507, %506 : vector<2x256xf32>
    %cst_77 = arith.constant 0.000000e+00 : f32
    %509 = vector.shape_cast %95 : vector<1x256xi1> to vector<1x256xi1>
    %510 = vector.broadcast %509 : vector<1x256xi1> to vector<2x256xi1>
    %511 = vector.broadcast %cst_77 : f32 to vector<2x256xf32>
    %512 = arith.select %510, %508, %511 : vector<2x256xi1>, vector<2x256xf32>
    %513 = arith.addf %481, %512 : vector<2x256xf32>
    %514 = arith.addf %513, %486 : vector<2x256xf32>
    %515 = arith.addf %495, %504 : vector<2x256xf32>
    %516 = arith.addf %514, %515 : vector<2x256xf32>
    %517 = vector.extract_strided_slice %516 {offsets = [0, 0], sizes = [1, 256], strides = [1, 1]} : vector<2x256xf32> to vector<1x256xf32>
    %518 = vector.extract_strided_slice %516 {offsets = [1, 0], sizes = [1, 256], strides = [1, 1]} : vector<2x256xf32> to vector<1x256xf32>
    %519 = arith.addf %517, %518 : vector<1x256xf32>
    %520 = arith.negf %519 : vector<1x256xf32>
    %521 = math.exp %520 : vector<1x256xf32>
    %cst_78 = arith.constant 1.000000e+00 : f32
    %522 = vector.broadcast %cst_78 : f32 to vector<1x256xf32>
    %523 = arith.addf %522, %521 : vector<1x256xf32>
    %524 = arith.divf %522, %523 : vector<1x256xf32>
    %c0_79 = arith.constant 0 : index
    %c0_80 = arith.constant 0 : index
    %c0_81 = arith.constant 0 : index
    %525 = vector.load %arg5[%c0_79, %c0_80, %c0_81] : memref<1x32x256xf32, #tpu.memory_space<vmem>>, vector<1x32x256xf32>
    %526 = vector.shape_cast %525 : vector<1x32x256xf32> to vector<32x256xf32>
    %527 = vector.broadcast %524 : vector<1x256xf32> to vector<32x256xf32>
    %528 = arith.mulf %526, %527 : vector<32x256xf32>
    %c0_82 = arith.constant 0 : index
    %c0_83 = arith.constant 0 : index
    %c0_84 = arith.constant 0 : index
    %529 = vector.load %arg5[%c0_82, %c0_83, %c0_84] : memref<1x32x256xf32, #tpu.memory_space<vmem>>, vector<1x32x256xf32>
    %530 = vector.shape_cast %529 : vector<1x32x256xf32> to vector<32x256xf32>
    %531 = vector.shape_cast %528 : vector<32x256xf32> to vector<1x32x256xf32>
    tpu.vector_store %arg5[%c0_82, %c0_83, %c0_84], %531 {strides = array<i32>} : memref<1x32x256xf32, #tpu.memory_space<vmem>>, vector<1x32x256xf32>,
    return
  }
  func.func @transform_0(%arg0: i32) -> (i32, i32) {
    %c0_i32 = arith.constant 0 : i32
    %c0_i32_0 = arith.constant 0 : i32
    %c0_i32_1 = arith.constant 0 : i32
    return %c0_i32, %c0_i32_0 : i32, i32
  }
  func.func @transform_1(%arg0: i32) -> (i32, i32) {
    %c0_i32 = arith.constant 0 : i32
    %c0_i32_0 = arith.constant 0 : i32
    %c0_i32_1 = arith.constant 0 : i32
    return %c0_i32, %c0_i32_0 : i32, i32
  }
  func.func @transform_2(%arg0: i32) -> (i32, i32) {
    %c0_i32 = arith.constant 0 : i32
    %c0_i32_0 = arith.constant 0 : i32
    %c0_i32_1 = arith.constant 0 : i32
    return %c0_i32, %c0_i32_0 : i32, i32
  }
  func.func @transform_3(%arg0: i32) -> (i32, i32, i32) {
    %c0_i32 = arith.constant 0 : i32
    %c0_i32_0 = arith.constant 0 : i32
    %c0_i32_1 = arith.constant 0 : i32
    return %arg0, %c0_i32, %c0_i32_0 : i32, i32, i32
  }
  func.func @transform_4(%arg0: i32) -> (i32, i32, i32) {
    %c0_i32 = arith.constant 0 : i32
    %c0_i32_0 = arith.constant 0 : i32
    %c0_i32_1 = arith.constant 0 : i32
    return %arg0, %c0_i32, %c0_i32_0 : i32, i32, i32
  }
}

</mosaic_0001>

<llo_original>
// kernel: cbam_forward.1
$region0: #{cbam_forward.1}
  #allocation0 [shape = 'u32[]', space=smem, size = 0x4, offset = 0x4, fixed_abs, tag = 'smem constant byte address 0x4 - core index']
  #allocation1 [shape = 'u32[144,128]{1,0:T(1,128)}', space=vmem, size = 0x12000, scoped, tag = 'internal scratch']
  %s0 = inlined_call_operand.vmem [shape: f32[2,49], index: 0, kind: input, shape index: {}]
  %s1 = inlined_call_operand.vmem [shape: f32[32,2], index: 1, kind: input, shape index: {}]
  %s2 = inlined_call_operand.vmem [shape: f32[32,2], index: 2, kind: input, shape index: {}]
  %s3 = inlined_call_operand.vmem [shape: f32[2,32,256], index: 3, kind: input, shape index: {}]
  %s4 = inlined_call_operand.vmem [shape: f32[2,32,256], index: 4, kind: output, shape index: {}]
  %s5 = sld [smem:[#allocation0]]
  $region49: #{cbam_forward.1} parent=0
    _
  %s7 = ssub.s32 1, %s5
  %s8 = scalar_select 0, %s7, %s5
  loop: start=0, step=1, limit=4
  $region2: #{cbam_forward.1} parent=0 // loop_pre_header
    _
  $region3: #{cbam_forward.1} parent=0 // loop_header
    %s10 = sphi 0, %s14
    %p11 = scmp.ge.s32.totalorder %s10, 4
    %s18 = sphi 0, %s18
    %s20 = sphi 0, %s18
    %s21 = sphi 0, %s20
    %s35 = sphi 0, %s21
    %s39 = sphi 0, %s39
    %s41 = sphi 0, %s39
    %s42 = sphi 0, %s41
    %s56 = sphi 0, %s42
    %s60 = sphi 0, %s60
    %s62 = sphi 0, %s60
    %s63 = sphi 0, %s62
    %s77 = sphi 0, %s63
    %s83 = sphi 0, %s85
    %s86 = sphi 0, %s83
    %s87 = sphi 0, %s86
    %s103 = sphi 0, %s87
    %s109 = sphi 0, %s111
    %s112 = sphi 0, %s109
    %s113 = sphi 0, %s112
    %s129 = sphi 0, %s113
  $region4: #{cbam_forward.1} parent=0 // loop_header_branch
    %13 = sbr.rel (%p11) target = $region8
  $region5: #{cbam_forward.1} parent=0 // loop_body
    %s15 = ssub.s32 %s10, 1
    %s16 = ssub.s32 %s10, 2
    %s17 = sadd.s32 %s10, 1
    %s19 = sadd.s32 %s18, 1
    %p22 = scmp.eq.s32.totalorder %s10, 1
    %p23 = scmp.ne.s32.totalorder %s18, %s20
    %p24 = scmp.eq.s32.totalorder %s10, 0
    %p25 = por %p23, %p24
    %p26 = scmp.ne.s32.totalorder %s18, %s20
    %p27 = scmp.eq.s32.totalorder %s15, 1
    %p28 = por %p26, %p27
    %p29 = scmp.ne.s32.totalorder %s20, %s21
    %p30 = scmp.eq.s32.totalorder %s15, 0
    %p31 = por %p29, %p30
    %p32 = scmp.ne.s32.totalorder %s20, %s21
    %p33 = scmp.eq.s32.totalorder %s16, 1
    %p34 = por %p32, %p33
    %p36 = scmp.ne.s32.totalorder %s21, %s35
    %p37 = scmp.eq.s32.totalorder %s16, 0
    %p38 = por %p36, %p37
    %s40 = sadd.s32 %s39, 1
    %p43 = scmp.eq.s32.totalorder %s10, 1
    %p44 = scmp.ne.s32.totalorder %s39, %s41
    %p45 = scmp.eq.s32.totalorder %s10, 0
    %p46 = por %p44, %p45
    %p47 = scmp.ne.s32.totalorder %s39, %s41
    %p48 = scmp.eq.s32.totalorder %s15, 1
    %p49 = por %p47, %p48
    %p50 = scmp.ne.s32.totalorder %s41, %s42
    %p51 = scmp.eq.s32.totalorder %s15, 0
    %p52 = por %p50, %p51
    %p53 = scmp.ne.s32.totalorder %s41, %s42
    %p54 = scmp.eq.s32.totalorder %s16, 1
    %p55 = por %p53, %p54
    %p57 = scmp.ne.s32.totalorder %s42, %s56
    %p58 = scmp.eq.s32.totalorder %s16, 0
    %p59 = por %p57, %p58
    %s61 = sadd.s32 %s60, 1
    %p64 = scmp.eq.s32.totalorder %s10, 1
    %p65 = scmp.ne.s32.totalorder %s60, %s62
    %p66 = scmp.eq.s32.totalorder %s10, 0
    %p67 = por %p65, %p66
    %p68 = scmp.ne.s32.totalorder %s60, %s62
    %p69 = scmp.eq.s32.totalorder %s15, 1
    %p70 = por %p68, %p69
    %p71 = scmp.ne.s32.totalorder %s62, %s63
    %p72 = scmp.eq.s32.totalorder %s15, 0
    %p73 = por %p71, %p72
    %p74 = scmp.ne.s32.totalorder %s62, %s63
    %p75 = scmp.eq.s32.totalorder %s16, 1
    %p76 = por %p74, %p75
    %p78 = scmp.ne.s32.totalorder %s63, %s77
    %p79 = scmp.eq.s32.totalorder %s16, 0
    %p80 = por %p78, %p79
    %s81 = ssub.s32 %s10, %s17
    %p82 = scmp.eq.s32.totalorder %s81, 0
    %s84 = sadd.s32 %s83, 1
    %s85 = scalar_select %p82, %s83, %s84
    %p88 = pneg %p82
    %p89 = scmp.eq.s32.totalorder %s10, 1
    %p90 = por %p88, %p89
    %p91 = scmp.ne.s32.totalorder %s83, %s86
    %p92 = scmp.eq.s32.totalorder %s10, 0
    %p93 = por %p91, %p92
    %p94 = scmp.ne.s32.totalorder %s83, %s86
    %p95 = scmp.eq.s32.totalorder %s15, 1
    %p96 = por %p94, %p95
    %p97 = scmp.ne.s32.totalorder %s86, %s87
    %p98 = scmp.eq.s32.totalorder %s15, 0
    %p99 = por %p97, %p98
    %p100 = scmp.ne.s32.totalorder %s86, %s87
    %p101 = scmp.eq.s32.totalorder %s16, 1
    %p102 = por %p100, %p101
    %p104 = scmp.ne.s32.totalorder %s87, %s103
    %p105 = scmp.eq.s32.totalorder %s16, 0
    %p106 = por %p104, %p105
    %s107 = ssub.s32 %s10, %s17
    %p108 = scmp.eq.s32.totalorder %s107, 0
    %s110 = sadd.s32 %s109, 1
    %s111 = scalar_select %p108, %s109, %s110
    %p114 = pneg %p108
    %p115 = scmp.eq.s32.totalorder %s10, 1
    %p116 = por %p114, %p115
    %p117 = scmp.ne.s32.totalorder %s109, %s112
    %p118 = scmp.eq.s32.totalorder %s10, 0
    %p119 = por %p117, %p118
    %p120 = scmp.ne.s32.totalorder %s109, %s112
    %p121 = scmp.eq.s32.totalorder %s15, 1
    %p122 = por %p120, %p121
    %p123 = scmp.ne.s32.totalorder %s112, %s113
    %p124 = scmp.eq.s32.totalorder %s15, 0
    %p125 = por %p123, %p124
    %p126 = scmp.ne.s32.totalorder %s112, %s113
    %p127 = scmp.eq.s32.totalorder %s16, 1
    %p128 = por %p126, %p127
    %p130 = scmp.ne.s32.totalorder %s113, %s129
    %p131 = scmp.eq.s32.totalorder %s16, 0
    %p132 = por %p130, %p131
    %p133 = scmp.le.s32.totalorder 1, %s10
    %p134 = scmp.lt.s32.totalorder %s10, 3
    %p135 = pnand %p133, %p134
    %p136 = pneg %p135
    // Predicated region
    $region9: #{cbam_forward.1} parent=5 // pred_check
      _
    $region10: #{cbam_forward.1} parent=5 // pred_check_branch
      %138 = sbr.rel (%p135) target = $region12
    $region11: #{cbam_forward.1} parent=5 // pred_region
      %s139 = ssub.s32 %s10, 1
      // Predicated region
      $region13: #{cbam_forward.1} parent=11 // pred_check
        %p140 = pneg %p31
      $region14: #{cbam_forward.1} parent=11 // pred_check_branch
        %142 = sbr.rel (%p140) target = $region16
      $region15: #{cbam_forward.1} parent=11 // pred_region
        _
      $region16: #{cbam_forward.1} parent=11 // pred_fallthru
        _
      // Predicated region
      $region17: #{cbam_forward.1} parent=11 // pred_check
        %p143 = pneg %p52
      $region18: #{cbam_forward.1} parent=11 // pred_check_branch
        %145 = sbr.rel (%p143) target = $region20
      $region19: #{cbam_forward.1} parent=11 // pred_region
        _
      $region20: #{cbam_forward.1} parent=11 // pred_fallthru
        _
      // Predicated region
      $region21: #{cbam_forward.1} parent=11 // pred_check
        %p146 = pneg %p73
      $region22: #{cbam_forward.1} parent=11 // pred_check_branch
        %148 = sbr.rel (%p146) target = $region24
      $region23: #{cbam_forward.1} parent=11 // pred_region
        _
      $region24: #{cbam_forward.1} parent=11 // pred_fallthru
        _
    $region12: #{cbam_forward.1} parent=5 // pred_fallthru
      _
    %p149 = scmp.lt.s32.totalorder %s10, 2
    // Predicated region
    $region25: #{cbam_forward.1} parent=5 // pred_check
      %p150 = pneg %p149
    $region26: #{cbam_forward.1} parent=5 // pred_check_branch
      %152 = sbr.rel (%p150) target = $region28
    $region27: #{cbam_forward.1} parent=5 // pred_region
      // Predicated region
      $region29: #{cbam_forward.1} parent=27 // pred_check
        %p153 = pneg %p93
      $region30: #{cbam_forward.1} parent=27 // pred_check_branch
        %155 = sbr.rel (%p153) target = $region32
      $region31: #{cbam_forward.1} parent=27 // pred_region
        %p156 = scmp.lt.s32.totalorder %s10, 1
        %s157 = scalar_select %p156, %s10, 1
        %s158 = smul.addr %s157, 8
        %s159 = smul.addr %s158, 8
        %s160 = scalar_lea.vmem %s3, %s159
      $region32: #{cbam_forward.1} parent=27 // pred_fallthru
        _
    $region28: #{cbam_forward.1} parent=5 // pred_fallthru
      _
    %p161 = scmp.le.s32.totalorder 1, %s10
    %p162 = scmp.lt.s32.totalorder %s10, 3
    %p163 = pnand %p161, %p162
    %p164 = pneg %p163
    // Predicated region
    $region33: #{cbam_forward.1} parent=5 // pred_check
      _
    $region34: #{cbam_forward.1} parent=5 // pred_check_branch
      %166 = sbr.rel (%p163) target = $region36
    $region35: #{cbam_forward.1} parent=5 // pred_region
      %s167 = ssub.s32 %s10, 1
      %p168 = pneg %p31
      %p169 = pneg %p28
      %p170 = pneg %p52
      %p171 = pneg %p49
      %p172 = pneg %p73
      %p173 = pneg %p70
      %p174 = scmp.lt.s32.totalorder %s15, 1
      %s175 = scalar_select %p174, %s15, 1
      %s176 = smul.addr %s175, 8
      %s177 = smul.addr %s176, 8
      %s178 = scalar_lea.vmem %s3, %s177
      %p179 = pneg %p99
      %p180 = pneg %p96
      %p181 = pneg %p125
      %p182 = pneg %p122
      %p183 = scmp.lt.s32.totalorder %s15, 1
      %s184 = scalar_select %p183, %s15, 1
      %s185 = smul.addr %s184, 8
      %s186 = smul.addr %s185, 8
      %s187 = scalar_lea.vmem %s4, %s186
      %p188 = scmp.lt.s32.totalorder %s15, 1
      %s189 = scalar_select %p188, %s15, 1
      %s190 = smul.addr %s189, 8
      %s191 = smul.addr %s190, 8
      %s192 = scalar_lea.vmem %s3, %s191
      %p193 = scmp.lt.s32.totalorder %s15, 1
      %s194 = scalar_select %p193, %s15, 1
      %s195 = smul.addr %s194, 8
      %s196 = smul.addr %s195, 8
      %s197 = scalar_lea.vmem %s4, %s196
      %v198 = vld [vmem:[%s192] sm:$0xff]
      %v199 = vld [vmem:[%s192 + $0x8] sm:$0xff]
      %v200 = vld [vmem:[%s192 + $0x10] sm:$0xff]
      %v201 = vld [vmem:[%s192 + $0x18] sm:$0xff]
      %v202 = vld [vmem:[%s192 + $0x20] sm:$0xff]
      %v203 = vld [vmem:[%s192 + $0x28] sm:$0xff]
      %v204 = vld [vmem:[%s192 + $0x30] sm:$0xff]
      %v205 = vld [vmem:[%s192 + $0x38] sm:$0xff]
      %v206 = vadd.f32 %v198, %v199
      %207 = vadd.xlane.f32.xlu0 %v206
      %v208 = vpop.xlane.xlu0 %207
      %v209 = vadd.f32 %v200, %v201
      %210 = vadd.xlane.f32.xlu0 %v209
      %v211 = vpop.xlane.xlu0 %210
      %v212 = vadd.f32 %v202, %v203
      %213 = vadd.xlane.f32.xlu0 %v212
      %v214 = vpop.xlane.xlu0 %213
      %v215 = vadd.f32 %v204, %v205
      %216 = vadd.xlane.f32.xlu0 %v215
      %v217 = vpop.xlane.xlu0 %216
      %v218 = vmul.f32 %v208, 0.00390625
      %v219 = vmul.f32 %v211, 0.00390625
      %v220 = vmul.f32 %v214, 0.00390625
      %v221 = vmul.f32 %v217, 0.00390625
      %v222 = vmax.f32 %v198, %v199
      %223 = vmax.xlane.f32.xlu0 %v222
      %v224 = vpop.xlane.xlu0 %223
      %v225 = vmax.f32 %v200, %v201
      %226 = vmax.xlane.f32.xlu0 %v225
      %v227 = vpop.xlane.xlu0 %226
      %v228 = vmax.f32 %v202, %v203
      %229 = vmax.xlane.f32.xlu0 %v228
      %v230 = vpop.xlane.xlu0 %229
      %v231 = vmax.f32 %v204, %v205
      %232 = vmax.xlane.f32.xlu0 %v231
      %v233 = vpop.xlane.xlu0 %232
      %v234 = vld [vmem:[%s1] sm:$0xff]
      %v235 = vld [vmem:[%s1 + $0x8] sm:$0xff]
      %v236 = vld [vmem:[%s1 + $0x10] sm:$0xff]
      %v237 = vld [vmem:[%s1 + $0x18] sm:$0xff]
      %v238 = vmul.f32 %v234, %v218
      %v239 = vmul.f32 %v235, %v219
      %v240 = vmul.f32 %v236, %v220
      %v241 = vmul.f32 %v237, %v221
      %vm242 = vcmask 15360
      %v243 = vsel %vm242, %v238, 0.0
      %v244 = vsel %vm242, %v239, 0.0
      %v245 = vadd.f32 %v243, %v244
      %v246 = vsel %vm242, %v240, 0.0
      %v247 = vadd.f32 %v245, %v246
      %v248 = vsel %vm242, %v241, 0.0
      %v249 = vadd.f32 %v247, %v248
      %v250 = vrot.slane %v249, 4
      %v251 = vadd.f32 %v249, %v250
      %v252 = vrot.slane %v251, 2
      %v253 = vadd.f32 %v251, %v252
      %v254 = vrot.slane %v253, 1
      %v255 = vadd.f32 %v253, %v254
      %v256 = vmax.f32 %v255, 0.0
      %v257 = vmul.f32 %v234, %v224
      %v258 = vmul.f32 %v235, %v227
      %v259 = vmul.f32 %v236, %v230
      %v260 = vmul.f32 %v237, %v233
      %v261 = vsel %vm242, %v257, 0.0
      %v262 = vsel %vm242, %v258, 0.0
      %v263 = vadd.f32 %v261, %v262
      %v264 = vsel %vm242, %v259, 0.0
      %v265 = vadd.f32 %v263, %v264
      %v266 = vsel %vm242, %v260, 0.0
      %v267 = vadd.f32 %v265, %v266
      %v268 = vrot.slane %v267, 4
      %v269 = vadd.f32 %v267, %v268
      %v270 = vrot.slane %v269, 2
      %v271 = vadd.f32 %v269, %v270
      %v272 = vrot.slane %v271, 1
      %v273 = vadd.f32 %v271, %v272
      %v274 = vmax.f32 %v273, 0.0
      %v275 = vadd.f32 %v256, %v274
      %v276 = vld [vmem:[%s2] sm:$0xff]
      %v277 = vld [vmem:[%s2 + $0x8] sm:$0xff]
      %v278 = vld [vmem:[%s2 + $0x10] sm:$0xff]
      %v279 = vld [vmem:[%s2 + $0x18] sm:$0xff]
      %v280 = vmul.f32 %v276, %v275
      %v281 = vmul.f32 %v277, %v275
      %v282 = vmul.f32 %v278, %v275
      %v283 = vmul.f32 %v279, %v275
      %v284 = vsel %vm242, %v280, 0.0
      %285 = vadd.xlane.f32.xlu0 %v284
      %v286 = vpop.xlane.xlu0 %285
      %v287 = vsel %vm242, %v281, 0.0
      %288 = vadd.xlane.f32.xlu0 %v287
      %v289 = vpop.xlane.xlu0 %288
      %v290 = vsel %vm242, %v282, 0.0
      %291 = vadd.xlane.f32.xlu0 %v290
      %v292 = vpop.xlane.xlu0 %291
      %v293 = vsel %vm242, %v283, 0.0
      %294 = vadd.xlane.f32.xlu0 %v293
      %v295 = vpop.xlane.xlu0 %294
      %v296 = vxor.u32 %v286, 2147483648
      %v297 = vxor.u32 %v289, 2147483648
      %v298 = vxor.u32 %v292, 2147483648
      %v299 = vxor.u32 %v295, 2147483648
      %v300 = vmul.f32 %v296, 1.442695
      %v301 = vpow.pop %v300
      %v302 = vmul.f32 %v297, 1.442695
      %v303 = vpow.pop %v302
      %v304 = vmul.f32 %v298, 1.442695
      %v305 = vpow.pop %v304
      %v306 = vmul.f32 %v299, 1.442695
      %v307 = vpow.pop %v306
      %v308 = vadd.f32 %v301, 1.0
      %v309 = vadd.f32 %v303, 1.0
      %v310 = vadd.f32 %v305, 1.0
      %v311 = vadd.f32 %v307, 1.0
      %v312 = vrcp.pop %v308
      %v313 = vmul.f32 1.0, %v312
      %v314 = vrcp.pop %v309
      %v315 = vmul.f32 1.0, %v314
      %v316 = vrcp.pop %v310
      %v317 = vmul.f32 1.0, %v316
      %v318 = vrcp.pop %v311
      %v319 = vmul.f32 1.0, %v318
      %v320 = vmul.f32 %v198, %v313
      %v321 = vmul.f32 %v199, %v313
      %v322 = vmul.f32 %v200, %v315
      %v323 = vmul.f32 %v201, %v315
      %v324 = vmul.f32 %v202, %v317
      %v325 = vmul.f32 %v203, %v317
      %v326 = vmul.f32 %v204, %v319
      %v327 = vmul.f32 %v205, %v319
      %328 = vst [vmem:[%s197] sm:$0xff] %v320
      %329 = vst [vmem:[%s197 + $0x8] sm:$0xff] %v321
      %330 = vst [vmem:[%s197 + $0x10] sm:$0xff] %v322
      %331 = vst [vmem:[%s197 + $0x18] sm:$0xff] %v323
      %332 = vst [vmem:[%s197 + $0x20] sm:$0xff] %v324
      %333 = vst [vmem:[%s197 + $0x28] sm:$0xff] %v325
      %334 = vst [vmem:[%s197 + $0x30] sm:$0xff] %v326
      %335 = vst [vmem:[%s197 + $0x38] sm:$0xff] %v327
      %v336 = vld [vmem:[%s197] sm:$0xff]
      %v337 = vld [vmem:[%s197 + $0x8] sm:$0xff]
      %v338 = vld [vmem:[%s197 + $0x10] sm:$0xff]
      %v339 = vld [vmem:[%s197 + $0x18] sm:$0xff]
      %v340 = vld [vmem:[%s197 + $0x20] sm:$0xff]
      %v341 = vld [vmem:[%s197 + $0x28] sm:$0xff]
      %v342 = vld [vmem:[%s197 + $0x30] sm:$0xff]
      %v343 = vld [vmem:[%s197 + $0x38] sm:$0xff]
      %v344 = vadd.f32 %v336, %v338
      %v345 = vadd.f32 %v344, %v340
      %v346 = vadd.f32 %v345, %v342
      %v347 = vrot.slane %v346, 4
      %v348 = vadd.f32 %v346, %v347
      %v349 = vrot.slane %v348, 2
      %v350 = vadd.f32 %v348, %v349
      %v351 = vrot.slane %v350, 1
      %v352 = vadd.f32 %v350, %v351
      %v353 = vadd.f32 %v337, %v339
      %v354 = vadd.f32 %v353, %v341
      %v355 = vadd.f32 %v354, %v343
      %v356 = vrot.slane %v355, 4
      %v357 = vadd.f32 %v355, %v356
      %v358 = vrot.slane %v357, 2
      %v359 = vadd.f32 %v357, %v358
      %v360 = vrot.slane %v359, 1
      %v361 = vadd.f32 %v359, %v360
      %v362 = vmul.f32 %v352, 0.03125
      %v363 = vmul.f32 %v361, 0.03125
      %v364 = vmax.f32 %v336, %v340
      %v365 = vmax.f32 %v338, %v342
      %v366 = vmax.f32 %v364, %v365
      %v367 = vrot.slane %v366, 4
      %v368 = vmax.f32 %v366, %v367
      %v369 = vrot.slane %v368, 2
      %v370 = vmax.f32 %v368, %v369
      %v371 = vrot.slane %v370, 1
      %v372 = vmax.f32 %v370, %v371
      %v373 = vmax.f32 %v337, %v341
      %v374 = vmax.f32 %v339, %v343
      %v375 = vmax.f32 %v373, %v374
      %v376 = vrot.slane %v375, 4
      %v377 = vmax.f32 %v375, %v376
      %v378 = vrot.slane %v377, 2
      %v379 = vmax.f32 %v377, %v378
      %v380 = vrot.slane %v379, 1
      %v381 = vmax.f32 %v379, %v380
      %vm382 = vcmask 1040384
      %v383 = vsel %vm382, %v362, %v372
      %v384 = vsel %vm382, %v363, %v381
      %v385 = vlaneseq
      %v386 = vand.u32 %v385, 127
      %v387 = vadd.s32 %v386, 128
      %vm388 = vcmp.lt.s32.totalorder %v386, 0
      %v389 = vsub.s32 0, %v386
      %v390 = vsel %vm388, %v389, %v386
      %v391 = vshrl.u32 %v390, 4
      %v392 = vand.u32 %v390, 15
      %v393 = vsub.s32 0, %v392
      %v394 = vsel %vm388, %v393, %v392
      %vm395 = vcmp.lt.s32.totalorder %v387, 0
      %v396 = vsub.s32 0, %v387
      %v397 = vsel %vm395, %v396, %v387
      %v398 = vshrl.u32 %v397, 4
      %v399 = vand.u32 %v397, 15
      %v400 = vsub.s32 0, %v399
      %v401 = vsel %vm395, %v400, %v399
      %vm402 = vcmp.ne.s32.totalorder %v394, 0
      %vm403 = vcmp.ne.s32.totalorder %v401, 0
      %vm404 = vcmp.lt.s32.totalorder %v394, 0
      %vm405 = vcmp.lt.s32.totalorder %v401, 0
      %vm406 = vmand %vm404, %vm402
      %vm407 = vmand %vm405, %vm403
      %v408 = vadd.s32 %v394, 16
      %v409 = vadd.s32 %v401, 16
      %v410 = vsel %vm406, %v408, %v394
      %v411 = vsel %vm407, %v409, %v401
      %vm412 = vcmp.ge.s32.totalorder %v410, 3
      %vm413 = vcmp.ge.s32.totalorder %v411, 3
      %vm414 = vcmp.lt.s32.totalorder %v410, 19
      %vm415 = vcmp.lt.s32.totalorder %v411, 19
      %vm416 = vmand %vm412, %vm414
      %vm417 = vmand %vm413, %vm415
      %vm418 = vcmp.ge.s32.totalorder %v410, 2
      %vm419 = vcmp.ge.s32.totalorder %v411, 2
      %vm420 = vcmp.lt.s32.totalorder %v410, 18
      %vm421 = vcmp.lt.s32.totalorder %v411, 18
      %vm422 = vmand %vm418, %vm420
      %vm423 = vmand %vm419, %vm421
      %vm424 = vcmp.ge.s32.totalorder %v410, 1
      %vm425 = vcmp.ge.s32.totalorder %v411, 1
      %vm426 = vcmp.lt.s32.totalorder %v410, 17
      %vm427 = vcmp.lt.s32.totalorder %v411, 17
      %vm428 = vmand %vm424, %vm426
      %vm429 = vmand %vm425, %vm427
      %vm430 = vcmp.ge.s32.totalorder %v410, 4294967295
      %vm431 = vcmp.ge.s32.totalorder %v411, 4294967295
      %vm432 = vcmp.lt.s32.totalorder %v410, 15
      %vm433 = vcmp.lt.s32.totalorder %v411, 15
      %vm434 = vmand %vm430, %vm432
      %vm435 = vmand %vm431, %vm433
      %vm436 = vcmp.ge.s32.totalorder %v410, 4294967294
      %vm437 = vcmp.ge.s32.totalorder %v411, 4294967294
      %vm438 = vcmp.lt.s32.totalorder %v410, 14
      %vm439 = vcmp.lt.s32.totalorder %v411, 14
      %vm440 = vmand %vm436, %vm438
      %vm441 = vmand %vm437, %vm439
      %vm442 = vcmp.ge.s32.totalorder %v410, 4294967293
      %vm443 = vcmp.ge.s32.totalorder %v411, 4294967293
      %vm444 = vcmp.lt.s32.totalorder %v410, 13
      %vm445 = vcmp.lt.s32.totalorder %v411, 13
      %vm446 = vmand %vm442, %vm444
      %vm447 = vmand %vm443, %vm445
      %v448 = vld [vmem:[%s0] sm:$0x3]
      %450 = vset.pattern.permute.xlu0 0
      %451 = vperm.xlu0 %450, %v448
      %v452 = vpop.permute.xlu0 %451
      %v454 = vmul.f32 %v452, 0.0
      %v455 = vmul.f32 %v452, %v383
      %v456 = vmul.f32 %v452, %v384
      %v457 = vsel %vm416, 1, 0
      %v458 = vsel %vm417, 1, 0
      %vm459 = vcmp.eq.s32.totalorder %v457, 1
      %vm460 = vcmp.eq.s32.totalorder %v458, 1
      %464 = vrot.lane.b32.xlu0 %v454, 51
      %v465 = vpop.permute.xlu0 %464
      %466 = vrot.lane.b32.xlu0 %v455, 51
      %v467 = vpop.permute.xlu0 %466
      %468 = vrot.lane.b32.xlu0 %v456, 51
      %v469 = vpop.permute.xlu0 %468
      %vm470 = vcmask 416768
      %v471 = vsel %vm470, %v465, %v467
      %v472 = vsel %vm470, %v467, %v469
      %v475 = vsel %vm459, %v471, 0.0
      %v476 = vsel %vm460, %v472, 0.0
      %v477 = vadd.f32 %v475, 0.0
      %v478 = vadd.f32 %v476, 0.0
      %479 = vset.pattern.permute.xlu0 1
      %480 = vperm.xlu0 %479, %v448
      %v481 = vpop.permute.xlu0 %480
      %v483 = vmul.f32 %v481, 0.0
      %v484 = vmul.f32 %v481, %v383
      %v485 = vmul.f32 %v481, %v384
      %v486 = vsel %vm422, 1, 0
      %v487 = vsel %vm423, 1, 0
      %vm488 = vcmp.eq.s32.totalorder %v486, 1
      %vm489 = vcmp.eq.s32.totalorder %v487, 1
      %493 = vrot.lane.b32.xlu0 %v483, 50
      %v494 = vpop.permute.xlu0 %493
      %495 = vrot.lane.b32.xlu0 %v484, 50
      %v496 = vpop.permute.xlu0 %495
      %497 = vrot.lane.b32.xlu0 %v485, 50
      %v498 = vpop.permute.xlu0 %497
      %vm499 = vcmask 408576
      %v500 = vsel %vm499, %v494, %v496
      %v501 = vsel %vm499, %v496, %v498
      %v504 = vsel %vm488, %v500, 0.0
      %v505 = vsel %vm489, %v501, 0.0
      %v506 = vadd.f32 %v504, 0.0
      %v507 = vadd.f32 %v505, 0.0
      %508 = vset.pattern.permute.xlu0 2
      %509 = vperm.xlu0 %508, %v448
      %v510 = vpop.permute.xlu0 %509
      %v512 = vmul.f32 %v510, 0.0
      %v513 = vmul.f32 %v510, %v383
      %v514 = vmul.f32 %v510, %v384
      %v515 = vsel %vm428, 1, 0
      %v516 = vsel %vm429, 1, 0
      %vm517 = vcmp.eq.s32.totalorder %v515, 1
      %vm518 = vcmp.eq.s32.totalorder %v516, 1
      %522 = vrot.lane.b32.xlu0 %v512, 49
      %v523 = vpop.permute.xlu0 %522
      %524 = vrot.lane.b32.xlu0 %v513, 49
      %v525 = vpop.permute.xlu0 %524
      %526 = vrot.lane.b32.xlu0 %v514, 49
      %v527 = vpop.permute.xlu0 %526
      %vm528 = vcmask 400384
      %v529 = vsel %vm528, %v523, %v525
      %v530 = vsel %vm528, %v525, %v527
      %v533 = vsel %vm517, %v529, 0.0
      %v534 = vsel %vm518, %v530, 0.0
      %v535 = vadd.f32 %v533, 0.0
      %v536 = vadd.f32 %v534, 0.0
      %537 = vset.pattern.permute.xlu0 3
      %538 = vperm.xlu0 %537, %v448
      %v539 = vpop.permute.xlu0 %538
      %v541 = vmul.f32 %v539, 0.0
      %v542 = vmul.f32 %v539, %v383
      %v543 = vmul.f32 %v539, %v384
      %v544 = vadd.f32 %v541, 0.0
      %v545 = vadd.f32 %v542, 0.0
      %v546 = vadd.f32 %v543, 0.0
      %547 = vset.pattern.permute.xlu0 4
      %548 = vperm.xlu0 %547, %v448
      %v549 = vpop.permute.xlu0 %548
      %v551 = vmul.f32 %v549, 0.0
      %v552 = vmul.f32 %v549, %v383
      %v553 = vmul.f32 %v549, %v384
      %v554 = vsel %vm434, 1, 0
      %v555 = vsel %vm435, 1, 0
      %vm556 = vcmp.eq.s32.totalorder %v554, 1
      %vm557 = vcmp.eq.s32.totalorder %v555, 1
      %561 = vrot.lane.b32.xlu0 %v551, 47
      %v562 = vpop.permute.xlu0 %561
      %563 = vrot.lane.b32.xlu0 %v552, 47
      %v564 = vpop.permute.xlu0 %563
      %565 = vrot.lane.b32.xlu0 %v553, 47
      %v566 = vpop.permute.xlu0 %565
      %vm567 = vcmask 384000
      %v568 = vsel %vm567, %v562, %v564
      %v569 = vsel %vm567, %v564, %v566
      %v572 = vsel %vm556, %v568, 0.0
      %v573 = vsel %vm557, %v569, 0.0
      %v574 = vadd.f32 %v477, %v572
      %v575 = vadd.f32 %v478, %v573
      %576 = vset.pattern.permute.xlu0 5
      %577 = vperm.xlu0 %576, %v448
      %v578 = vpop.permute.xlu0 %577
      %v580 = vmul.f32 %v578, 0.0
      %v581 = vmul.f32 %v578, %v383
      %v582 = vmul.f32 %v578, %v384
      %v583 = vsel %vm440, 1, 0
      %v584 = vsel %vm441, 1, 0
      %vm585 = vcmp.eq.s32.totalorder %v583, 1
      %vm586 = vcmp.eq.s32.totalorder %v584, 1
      %590 = vrot.lane.b32.xlu0 %v580, 46
      %v591 = vpop.permute.xlu0 %590
      %592 = vrot.lane.b32.xlu0 %v581, 46
      %v593 = vpop.permute.xlu0 %592
      %594 = vrot.lane.b32.xlu0 %v582, 46
      %v595 = vpop.permute.xlu0 %594
      %vm596 = vcmask 375808
      %v597 = vsel %vm596, %v591, %v593
      %v598 = vsel %vm596, %v593, %v595
      %v601 = vsel %vm585, %v597, 0.0
      %v602 = vsel %vm586, %v598, 0.0
      %v603 = vadd.f32 %v506, %v601
      %v604 = vadd.f32 %v507, %v602
      %605 = vset.pattern.permute.xlu0 6
      %606 = vperm.xlu0 %605, %v448
      %v607 = vpop.permute.xlu0 %606
      %v609 = vmul.f32 %v607, 0.0
      %v610 = vmul.f32 %v607, %v383
      %v611 = vmul.f32 %v607, %v384
      %v612 = vsel %vm446, 1, 0
      %v613 = vsel %vm447, 1, 0
      %vm614 = vcmp.eq.s32.totalorder %v612, 1
      %vm615 = vcmp.eq.s32.totalorder %v613, 1
      %619 = vrot.lane.b32.xlu0 %v609, 45
      %v620 = vpop.permute.xlu0 %619
      %621 = vrot.lane.b32.xlu0 %v610, 45
      %v622 = vpop.permute.xlu0 %621
      %623 = vrot.lane.b32.xlu0 %v611, 45
      %v624 = vpop.permute.xlu0 %623
      %vm625 = vcmask 367616
      %v626 = vsel %vm625, %v620, %v622
      %v627 = vsel %vm625, %v622, %v624
      %v630 = vsel %vm614, %v626, 0.0
      %v631 = vsel %vm615, %v627, 0.0
      %v632 = vadd.f32 %v535, %v630
      %v633 = vadd.f32 %v536, %v631
      %634 = vset.pattern.permute.xlu0 7
      %635 = vperm.xlu0 %634, %v448
      %v636 = vpop.permute.xlu0 %635
      %v638 = vmul.f32 %v636, 0.0
      %v639 = vmul.f32 %v636, %v383
      %v640 = vmul.f32 %v636, %v384
      %644 = vrot.lane.b32.xlu0 %v638, 35
      %v645 = vpop.permute.xlu0 %644
      %646 = vrot.lane.b32.xlu0 %v639, 35
      %v647 = vpop.permute.xlu0 %646
      %648 = vrot.lane.b32.xlu0 %v640, 35
      %v649 = vpop.permute.xlu0 %648
      %vm650 = vcmask 285696
      %v651 = vsel %vm650, %v645, %v647
      %v652 = vsel %vm650, %v647, %v649
      %v655 = vsel %vm459, %v651, 0.0
      %v656 = vsel %vm460, %v652, 0.0
      %659 = vrot.lane.b32.xlu0 %v655, 80
      %v660 = vpop.permute.xlu0 %659
      %661 = vrot.lane.b32.xlu0 %v656, 80
      %v662 = vpop.permute.xlu0 %661
      %vm663 = vcmask 654336
      %v664 = vsel %vm663, %v660, %v662
      %v668 = vadd.f32 %v544, %v660
      %v669 = vadd.f32 %v545, %v664
      %v670 = vadd.f32 %v546, %v662
      %671 = vset.pattern.permute.xlu0 8
      %672 = vperm.xlu0 %671, %v448
      %v673 = vpop.permute.xlu0 %672
      %v675 = vmul.f32 %v673, 0.0
      %v676 = vmul.f32 %v673, %v383
      %v677 = vmul.f32 %v673, %v384
      %681 = vrot.lane.b32.xlu0 %v675, 34
      %v682 = vpop.permute.xlu0 %681
      %683 = vrot.lane.b32.xlu0 %v676, 34
      %v684 = vpop.permute.xlu0 %683
      %685 = vrot.lane.b32.xlu0 %v677, 34
      %v686 = vpop.permute.xlu0 %685
      %vm687 = vcmask 277504
      %v688 = vsel %vm687, %v682, %v684
      %v689 = vsel %vm687, %v684, %v686
      %v692 = vsel %vm488, %v688, 0.0
      %v693 = vsel %vm489, %v689, 0.0
      %v694 = vadd.f32 %v574, %v692
      %v695 = vadd.f32 %v575, %v693
      %696 = vset.pattern.permute.xlu0 9
      %697 = vperm.xlu0 %696, %v448
      %v698 = vpop.permute.xlu0 %697
      %v700 = vmul.f32 %v698, 0.0
      %v701 = vmul.f32 %v698, %v383
      %v702 = vmul.f32 %v698, %v384
      %706 = vrot.lane.b32.xlu0 %v700, 33
      %v707 = vpop.permute.xlu0 %706
      %708 = vrot.lane.b32.xlu0 %v701, 33
      %v709 = vpop.permute.xlu0 %708
      %710 = vrot.lane.b32.xlu0 %v702, 33
      %v711 = vpop.permute.xlu0 %710
      %vm712 = vcmask 269312
      %v713 = vsel %vm712, %v707, %v709
      %v714 = vsel %vm712, %v709, %v711
      %v717 = vsel %vm517, %v713, 0.0
      %v718 = vsel %vm518, %v714, 0.0
      %v719 = vadd.f32 %v603, %v717
      %v720 = vadd.f32 %v604, %v718
      %721 = vset.pattern.permute.xlu0 10
      %722 = vperm.xlu0 %721, %v448
      %v723 = vpop.permute.xlu0 %722
      %v725 = vmul.f32 %v723, 0.0
      %v726 = vmul.f32 %v723, %v383
      %v727 = vmul.f32 %v723, %v384
      %731 = vrot.lane.b32.xlu0 %v725, 32
      %v732 = vpop.permute.xlu0 %731
      %733 = vrot.lane.b32.xlu0 %v726, 32
      %v734 = vpop.permute.xlu0 %733
      %735 = vrot.lane.b32.xlu0 %v727, 32
      %v736 = vpop.permute.xlu0 %735
      %vm737 = vcmask 261120
      %v738 = vsel %vm737, %v732, %v734
      %v739 = vsel %vm737, %v734, %v736
      %v742 = vadd.f32 %v632, %v738
      %v743 = vadd.f32 %v633, %v739
      %744 = vset.pattern.permute.xlu0 11
      %745 = vperm.xlu0 %744, %v448
      %v746 = vpop.permute.xlu0 %745
      %v748 = vmul.f32 %v746, 0.0
      %v749 = vmul.f32 %v746, %v383
      %v750 = vmul.f32 %v746, %v384
      %754 = vrot.lane.b32.xlu0 %v748, 31
      %v755 = vpop.permute.xlu0 %754
      %756 = vrot.lane.b32.xlu0 %v749, 31
      %v757 = vpop.permute.xlu0 %756
      %758 = vrot.lane.b32.xlu0 %v750, 31
      %v759 = vpop.permute.xlu0 %758
      %vm760 = vcmask 252928
      %v761 = vsel %vm760, %v755, %v757
      %v762 = vsel %vm760, %v757, %v759
      %v765 = vsel %vm556, %v761, 0.0
      %v766 = vsel %vm557, %v762, 0.0
      %769 = vrot.lane.b32.xlu0 %v765, 80
      %v770 = vpop.permute.xlu0 %769
      %771 = vrot.lane.b32.xlu0 %v766, 80
      %v772 = vpop.permute.xlu0 %771
      %v773 = vsel %vm663, %v770, %v772
      %v777 = vadd.f32 %v668, %v770
      %v778 = vadd.f32 %v669, %v773
      %v779 = vadd.f32 %v670, %v772
      %780 = vset.pattern.permute.xlu0 12
      %781 = vperm.xlu0 %780, %v448
      %v782 = vpop.permute.xlu0 %781
      %v784 = vmul.f32 %v782, 0.0
      %v785 = vmul.f32 %v782, %v383
      %v786 = vmul.f32 %v782, %v384
      %790 = vrot.lane.b32.xlu0 %v784, 30
      %v791 = vpop.permute.xlu0 %790
      %792 = vrot.lane.b32.xlu0 %v785, 30
      %v793 = vpop.permute.xlu0 %792
      %794 = vrot.lane.b32.xlu0 %v786, 30
      %v795 = vpop.permute.xlu0 %794
      %vm796 = vcmask 244736
      %v797 = vsel %vm796, %v791, %v793
      %v798 = vsel %vm796, %v793, %v795
      %v801 = vsel %vm585, %v797, 0.0
      %v802 = vsel %vm586, %v798, 0.0
      %v803 = vadd.f32 %v694, %v801
      %v804 = vadd.f32 %v695, %v802
      %805 = vset.pattern.permute.xlu0 13
      %806 = vperm.xlu0 %805, %v448
      %v807 = vpop.permute.xlu0 %806
      %v809 = vmul.f32 %v807, 0.0
      %v810 = vmul.f32 %v807, %v383
      %v811 = vmul.f32 %v807, %v384
      %815 = vrot.lane.b32.xlu0 %v809, 29
      %v816 = vpop.permute.xlu0 %815
      %817 = vrot.lane.b32.xlu0 %v810, 29
      %v818 = vpop.permute.xlu0 %817
      %819 = vrot.lane.b32.xlu0 %v811, 29
      %v820 = vpop.permute.xlu0 %819
      %vm821 = vcmask 236544
      %v822 = vsel %vm821, %v816, %v818
      %v823 = vsel %vm821, %v818, %v820
      %v826 = vsel %vm614, %v822, 0.0
      %v827 = vsel %vm615, %v823, 0.0
      %v828 = vadd.f32 %v719, %v826
      %v829 = vadd.f32 %v720, %v827
      %830 = vset.pattern.permute.xlu0 14
      %831 = vperm.xlu0 %830, %v448
      %v832 = vpop.permute.xlu0 %831
      %v834 = vmul.f32 %v832, 0.0
      %v835 = vmul.f32 %v832, %v383
      %v836 = vmul.f32 %v832, %v384
      %840 = vrot.lane.b32.xlu0 %v834, 19
      %v841 = vpop.permute.xlu0 %840
      %842 = vrot.lane.b32.xlu0 %v835, 19
      %v843 = vpop.permute.xlu0 %842
      %844 = vrot.lane.b32.xlu0 %v836, 19
      %v845 = vpop.permute.xlu0 %844
      %vm846 = vcmask 154624
      %v847 = vsel %vm846, %v841, %v843
      %v848 = vsel %vm846, %v843, %v845
      %v851 = vsel %vm459, %v847, 0.0
      %v852 = vsel %vm460, %v848, 0.0
      %v853 = vadd.f32 %v742, %v851
      %v854 = vadd.f32 %v743, %v852
      %855 = vset.pattern.permute.xlu0 15
      %856 = vperm.xlu0 %855, %v448
      %v857 = vpop.permute.xlu0 %856
      %v859 = vmul.f32 %v857, 0.0
      %v860 = vmul.f32 %v857, %v383
      %v861 = vmul.f32 %v857, %v384
      %865 = vrot.lane.b32.xlu0 %v859, 18
      %v866 = vpop.permute.xlu0 %865
      %867 = vrot.lane.b32.xlu0 %v860, 18
      %v868 = vpop.permute.xlu0 %867
      %869 = vrot.lane.b32.xlu0 %v861, 18
      %v870 = vpop.permute.xlu0 %869
      %vm871 = vcmask 146432
      %v872 = vsel %vm871, %v866, %v868
      %v873 = vsel %vm871, %v868, %v870
      %v876 = vsel %vm488, %v872, 0.0
      %v877 = vsel %vm489, %v873, 0.0
      %880 = vrot.lane.b32.xlu0 %v876, 80
      %v881 = vpop.permute.xlu0 %880
      %882 = vrot.lane.b32.xlu0 %v877, 80
      %v883 = vpop.permute.xlu0 %882
      %v884 = vsel %vm663, %v881, %v883
      %v888 = vadd.f32 %v777, %v881
      %v889 = vadd.f32 %v778, %v884
      %v890 = vadd.f32 %v779, %v883
      %891 = vset.pattern.permute.xlu0 16
      %892 = vperm.xlu0 %891, %v448
      %v893 = vpop.permute.xlu0 %892
      %v895 = vmul.f32 %v893, 0.0
      %v896 = vmul.f32 %v893, %v383
      %v897 = vmul.f32 %v893, %v384
      %901 = vrot.lane.b32.xlu0 %v895, 17
      %v902 = vpop.permute.xlu0 %901
      %903 = vrot.lane.b32.xlu0 %v896, 17
      %v904 = vpop.permute.xlu0 %903
      %905 = vrot.lane.b32.xlu0 %v897, 17
      %v906 = vpop.permute.xlu0 %905
      %vm907 = vcmask 138240
      %v908 = vsel %vm907, %v902, %v904
      %v909 = vsel %vm907, %v904, %v906
      %v912 = vsel %vm517, %v908, 0.0
      %v913 = vsel %vm518, %v909, 0.0
      %v914 = vadd.f32 %v803, %v912
      %v915 = vadd.f32 %v804, %v913
      %916 = vset.pattern.permute.xlu0 17
      %917 = vperm.xlu0 %916, %v448
      %v918 = vpop.permute.xlu0 %917
      %v920 = vmul.f32 %v918, 0.0
      %v921 = vmul.f32 %v918, %v383
      %v922 = vmul.f32 %v918, %v384
      %926 = vrot.lane.b32.xlu0 %v920, 16
      %v927 = vpop.permute.xlu0 %926
      %928 = vrot.lane.b32.xlu0 %v921, 16
      %v929 = vpop.permute.xlu0 %928
      %930 = vrot.lane.b32.xlu0 %v922, 16
      %v931 = vpop.permute.xlu0 %930
      %vm932 = vcmask 130048
      %v933 = vsel %vm932, %v927, %v929
      %v934 = vsel %vm932, %v929, %v931
      %v937 = vadd.f32 %v828, %v933
      %v938 = vadd.f32 %v829, %v934
      %939 = vset.pattern.permute.xlu0 18
      %940 = vperm.xlu0 %939, %v448
      %v941 = vpop.permute.xlu0 %940
      %v943 = vmul.f32 %v941, 0.0
      %v944 = vmul.f32 %v941, %v383
      %v945 = vmul.f32 %v941, %v384
      %949 = vrot.lane.b32.xlu0 %v943, 15
      %v950 = vpop.permute.xlu0 %949
      %951 = vrot.lane.b32.xlu0 %v944, 15
      %v952 = vpop.permute.xlu0 %951
      %953 = vrot.lane.b32.xlu0 %v945, 15
      %v954 = vpop.permute.xlu0 %953
      %vm955 = vcmask 121856
      %v956 = vsel %vm955, %v950, %v952
      %v957 = vsel %vm955, %v952, %v954
      %v960 = vsel %vm556, %v956, 0.0
      %v961 = vsel %vm557, %v957, 0.0
      %v962 = vadd.f32 %v853, %v960
      %v963 = vadd.f32 %v854, %v961
      %964 = vset.pattern.permute.xlu0 19
      %965 = vperm.xlu0 %964, %v448
      %v966 = vpop.permute.xlu0 %965
      %v968 = vmul.f32 %v966, 0.0
      %v969 = vmul.f32 %v966, %v383
      %v970 = vmul.f32 %v966, %v384
      %974 = vrot.lane.b32.xlu0 %v968, 14
      %v975 = vpop.permute.xlu0 %974
      %976 = vrot.lane.b32.xlu0 %v969, 14
      %v977 = vpop.permute.xlu0 %976
      %978 = vrot.lane.b32.xlu0 %v970, 14
      %v979 = vpop.permute.xlu0 %978
      %vm980 = vcmask 113664
      %v981 = vsel %vm980, %v975, %v977
      %v982 = vsel %vm980, %v977, %v979
      %v985 = vsel %vm585, %v981, 0.0
      %v986 = vsel %vm586, %v982, 0.0
      %989 = vrot.lane.b32.xlu0 %v985, 80
      %v990 = vpop.permute.xlu0 %989
      %991 = vrot.lane.b32.xlu0 %v986, 80
      %v992 = vpop.permute.xlu0 %991
      %v993 = vsel %vm663, %v990, %v992
      %v997 = vadd.f32 %v888, %v990
      %v998 = vadd.f32 %v889, %v993
      %v999 = vadd.f32 %v890, %v992
      %1000 = vset.pattern.permute.xlu0 20
      %1001 = vperm.xlu0 %1000, %v448
      %v1002 = vpop.permute.xlu0 %1001
      %v1004 = vmul.f32 %v1002, 0.0
      %v1005 = vmul.f32 %v1002, %v383
      %v1006 = vmul.f32 %v1002, %v384
      %1010 = vrot.lane.b32.xlu0 %v1004, 13
      %v1011 = vpop.permute.xlu0 %1010
      %1012 = vrot.lane.b32.xlu0 %v1005, 13
      %v1013 = vpop.permute.xlu0 %1012
      %1014 = vrot.lane.b32.xlu0 %v1006, 13
      %v1015 = vpop.permute.xlu0 %1014
      %vm1016 = vcmask 105472
      %v1017 = vsel %vm1016, %v1011, %v1013
      %v1018 = vsel %vm1016, %v1013, %v1015
      %v1021 = vsel %vm614, %v1017, 0.0
      %v1022 = vsel %vm615, %v1018, 0.0
      %v1023 = vadd.f32 %v914, %v1021
      %v1024 = vadd.f32 %v915, %v1022
      %1025 = vset.pattern.permute.xlu0 21
      %1026 = vperm.xlu0 %1025, %v448
      %v1027 = vpop.permute.xlu0 %1026
      %v1029 = vmul.f32 %v1027, 0.0
      %v1030 = vmul.f32 %v1027, %v383
      %v1031 = vmul.f32 %v1027, %v384
      %1035 = vrot.lane.b32.xlu0 %v1029, 3
      %v1036 = vpop.permute.xlu0 %1035
      %1037 = vrot.lane.b32.xlu0 %v1030, 3
      %v1038 = vpop.permute.xlu0 %1037
      %1039 = vrot.lane.b32.xlu0 %v1031, 3
      %v1040 = vpop.permute.xlu0 %1039
      %vm1041 = vcmask 23552
      %v1042 = vsel %vm1041, %v1036, %v1038
      %v1043 = vsel %vm1041, %v1038, %v1040
      %v1046 = vsel %vm459, %v1042, 0.0
      %v1047 = vsel %vm460, %v1043, 0.0
      %v1048 = vadd.f32 %v937, %v1046
      %v1049 = vadd.f32 %v938, %v1047
      %1050 = vset.pattern.permute.xlu0 22
      %1051 = vperm.xlu0 %1050, %v448
      %v1052 = vpop.permute.xlu0 %1051
      %v1054 = vmul.f32 %v1052, 0.0
      %v1055 = vmul.f32 %v1052, %v383
      %v1056 = vmul.f32 %v1052, %v384
      %1060 = vrot.lane.b32.xlu0 %v1054, 2
      %v1061 = vpop.permute.xlu0 %1060
      %1062 = vrot.lane.b32.xlu0 %v1055, 2
      %v1063 = vpop.permute.xlu0 %1062
      %1064 = vrot.lane.b32.xlu0 %v1056, 2
      %v1065 = vpop.permute.xlu0 %1064
      %v1066 = vsel %vm242, %v1061, %v1063
      %v1067 = vsel %vm242, %v1063, %v1065
      %v1070 = vsel %vm488, %v1066, 0.0
      %v1071 = vsel %vm489, %v1067, 0.0
      %v1072 = vadd.f32 %v962, %v1070
      %v1073 = vadd.f32 %v963, %v1071
      %1074 = vset.pattern.permute.xlu0 23
      %1075 = vperm.xlu0 %1074, %v448
      %v1076 = vpop.permute.xlu0 %1075
      %v1078 = vmul.f32 %v1076, 0.0
      %v1079 = vmul.f32 %v1076, %v383
      %v1080 = vmul.f32 %v1076, %v384
      %1084 = vrot.lane.b32.xlu0 %v1078, 1
      %v1085 = vpop.permute.xlu0 %1084
      %1086 = vrot.lane.b32.xlu0 %v1079, 1
      %v1087 = vpop.permute.xlu0 %1086
      %1088 = vrot.lane.b32.xlu0 %v1080, 1
      %v1089 = vpop.permute.xlu0 %1088
      %vm1090 = vcmask 7168
      %v1091 = vsel %vm1090, %v1085, %v1087
      %v1092 = vsel %vm1090, %v1087, %v1089
      %v1095 = vsel %vm517, %v1091, 0.0
      %v1096 = vsel %vm518, %v1092, 0.0
      %1099 = vrot.lane.b32.xlu0 %v1095, 80
      %v1100 = vpop.permute.xlu0 %1099
      %1101 = vrot.lane.b32.xlu0 %v1096, 80
      %v1102 = vpop.permute.xlu0 %1101
      %v1103 = vsel %vm663, %v1100, %v1102
      %v1107 = vadd.f32 %v997, %v1100
      %v1108 = vadd.f32 %v998, %v1103
      %v1109 = vadd.f32 %v999, %v1102
      %1110 = vset.pattern.permute.xlu0 24
      %1111 = vperm.xlu0 %1110, %v448
      %v1112 = vpop.permute.xlu0 %1111
      %v1114 = vmul.f32 %v1112, %v383
      %v1115 = vmul.f32 %v1112, %v384
      %v1116 = vadd.f32 %v1023, %v1114
      %v1117 = vadd.f32 %v1024, %v1115
      %1118 = vset.pattern.permute.xlu0 25
      %1119 = vperm.xlu0 %1118, %v448
      %v1120 = vpop.permute.xlu0 %1119
      %v1122 = vmul.f32 %v1120, %v383
      %v1123 = vmul.f32 %v1120, %v384
      %v1124 = vmul.f32 %v1120, 0.0
      %1128 = vrot.lane.b32.xlu0 %v1122, 127
      %v1129 = vpop.permute.xlu0 %1128
      %1130 = vrot.lane.b32.xlu0 %v1123, 127
      %v1131 = vpop.permute.xlu0 %1130
      %1132 = vrot.lane.b32.xlu0 %v1124, 127
      %v1133 = vpop.permute.xlu0 %1132
      %vm1134 = vcmask 1039360
      %v1135 = vsel %vm1134, %v1129, %v1131
      %v1136 = vsel %vm1134, %v1131, %v1133
      %v1139 = vsel %vm556, %v1135, 0.0
      %v1140 = vsel %vm557, %v1136, 0.0
      %v1141 = vadd.f32 %v1048, %v1139
      %v1142 = vadd.f32 %v1049, %v1140
      %1143 = vset.pattern.permute.xlu0 26
      %1144 = vperm.xlu0 %1143, %v448
      %v1145 = vpop.permute.xlu0 %1144
      %v1147 = vmul.f32 %v1145, %v383
      %v1148 = vmul.f32 %v1145, %v384
      %v1149 = vmul.f32 %v1145, 0.0
      %1153 = vrot.lane.b32.xlu0 %v1147, 126
      %v1154 = vpop.permute.xlu0 %1153
      %1155 = vrot.lane.b32.xlu0 %v1148, 126
      %v1156 = vpop.permute.xlu0 %1155
      %1157 = vrot.lane.b32.xlu0 %v1149, 126
      %v1158 = vpop.permute.xlu0 %1157
      %vm1159 = vcmask 1031168
      %v1160 = vsel %vm1159, %v1154, %v1156
      %v1161 = vsel %vm1159, %v1156, %v1158
      %v1164 = vsel %vm585, %v1160, 0.0
      %v1165 = vsel %vm586, %v1161, 0.0
      %v1166 = vadd.f32 %v1072, %v1164
      %v1167 = vadd.f32 %v1073, %v1165
      %1168 = vset.pattern.permute.xlu0 27
      %1169 = vperm.xlu0 %1168, %v448
      %v1170 = vpop.permute.xlu0 %1169
      %v1172 = vmul.f32 %v1170, %v383
      %v1173 = vmul.f32 %v1170, %v384
      %v1174 = vmul.f32 %v1170, 0.0
      %1178 = vrot.lane.b32.xlu0 %v1172, 125
      %v1179 = vpop.permute.xlu0 %1178
      %1180 = vrot.lane.b32.xlu0 %v1173, 125
      %v1181 = vpop.permute.xlu0 %1180
      %1182 = vrot.lane.b32.xlu0 %v1174, 125
      %v1183 = vpop.permute.xlu0 %1182
      %vm1184 = vcmask 1022976
      %v1185 = vsel %vm1184, %v1179, %v1181
      %v1186 = vsel %vm1184, %v1181, %v1183
      %v1189 = vsel %vm614, %v1185, 0.0
      %v1190 = vsel %vm615, %v1186, 0.0
      %1193 = vrot.lane.b32.xlu0 %v1189, 80
      %v1194 = vpop.permute.xlu0 %1193
      %1195 = vrot.lane.b32.xlu0 %v1190, 80
      %v1196 = vpop.permute.xlu0 %1195
      %v1197 = vsel %vm663, %v1194, %v1196
      %v1201 = vadd.f32 %v1107, %v1194
      %v1202 = vadd.f32 %v1108, %v1197
      %v1203 = vadd.f32 %v1109, %v1196
      %1204 = vset.pattern.permute.xlu0 28
      %1205 = vperm.xlu0 %1204, %v448
      %v1206 = vpop.permute.xlu0 %1205
      %v1208 = vmul.f32 %v1206, %v383
      %v1209 = vmul.f32 %v1206, %v384
      %v1210 = vmul.f32 %v1206, 0.0
      %1214 = vrot.lane.b32.xlu0 %v1208, 115
      %v1215 = vpop.permute.xlu0 %1214
      %1216 = vrot.lane.b32.xlu0 %v1209, 115
      %v1217 = vpop.permute.xlu0 %1216
      %1218 = vrot.lane.b32.xlu0 %v1210, 115
      %v1219 = vpop.permute.xlu0 %1218
      %vm1220 = vcmask 941056
      %v1221 = vsel %vm1220, %v1215, %v1217
      %v1222 = vsel %vm1220, %v1217, %v1219
      %v1225 = vsel %vm459, %v1221, 0.0
      %v1226 = vsel %vm460, %v1222, 0.0
      %v1227 = vadd.f32 %v1116, %v1225
      %v1228 = vadd.f32 %v1117, %v1226
      %1229 = vset.pattern.permute.xlu0 29
      %1230 = vperm.xlu0 %1229, %v448
      %v1231 = vpop.permute.xlu0 %1230
      %v1233 = vmul.f32 %v1231, %v383
      %v1234 = vmul.f32 %v1231, %v384
      %v1235 = vmul.f32 %v1231, 0.0
      %1239 = vrot.lane.b32.xlu0 %v1233, 114
      %v1240 = vpop.permute.xlu0 %1239
      %1241 = vrot.lane.b32.xlu0 %v1234, 114
      %v1242 = vpop.permute.xlu0 %1241
      %1243 = vrot.lane.b32.xlu0 %v1235, 114
      %v1244 = vpop.permute.xlu0 %1243
      %vm1245 = vcmask 932864
      %v1246 = vsel %vm1245, %v1240, %v1242
      %v1247 = vsel %vm1245, %v1242, %v1244
      %v1250 = vsel %vm488, %v1246, 0.0
      %v1251 = vsel %vm489, %v1247, 0.0
      %v1252 = vadd.f32 %v1141, %v1250
      %v1253 = vadd.f32 %v1142, %v1251
      %1254 = vset.pattern.permute.xlu0 30
      %1255 = vperm.xlu0 %1254, %v448
      %v1256 = vpop.permute.xlu0 %1255
      %v1258 = vmul.f32 %v1256, %v383
      %v1259 = vmul.f32 %v1256, %v384
      %v1260 = vmul.f32 %v1256, 0.0
      %1264 = vrot.lane.b32.xlu0 %v1258, 113
      %v1265 = vpop.permute.xlu0 %1264
      %1266 = vrot.lane.b32.xlu0 %v1259, 113
      %v1267 = vpop.permute.xlu0 %1266
      %1268 = vrot.lane.b32.xlu0 %v1260, 113
      %v1269 = vpop.permute.xlu0 %1268
      %vm1270 = vcmask 924672
      %v1271 = vsel %vm1270, %v1265, %v1267
      %v1272 = vsel %vm1270, %v1267, %v1269
      %v1275 = vsel %vm517, %v1271, 0.0
      %v1276 = vsel %vm518, %v1272, 0.0
      %v1277 = vadd.f32 %v1166, %v1275
      %v1278 = vadd.f32 %v1167, %v1276
      %1279 = vset.pattern.permute.xlu0 31
      %1280 = vperm.xlu0 %1279, %v448
      %v1281 = vpop.permute.xlu0 %1280
      %v1283 = vmul.f32 %v1281, %v383
      %v1284 = vmul.f32 %v1281, %v384
      %v1285 = vmul.f32 %v1281, 0.0
      %1289 = vrot.lane.b32.xlu0 %v1283, 64
      %v1290 = vpop.permute.xlu0 %1289
      %1291 = vrot.lane.b32.xlu0 %v1284, 64
      %v1292 = vpop.permute.xlu0 %1291
      %1293 = vrot.lane.b32.xlu0 %v1285, 64
      %v1294 = vpop.permute.xlu0 %1293
      %vm1295 = vcmask 523264
      %v1296 = vsel %vm1295, %v1290, %v1292
      %v1297 = vsel %vm1295, %v1292, %v1294
      %v1301 = vadd.f32 %v1201, %v1290
      %v1302 = vadd.f32 %v1202, %v1296
      %v1303 = vadd.f32 %v1203, %v1297
      %1304 = vset.pattern.permute.xlu0 32
      %1305 = vperm.xlu0 %1304, %v448
      %v1306 = vpop.permute.xlu0 %1305
      %v1308 = vmul.f32 %v1306, %v383
      %v1309 = vmul.f32 %v1306, %v384
      %v1310 = vmul.f32 %v1306, 0.0
      %1314 = vrot.lane.b32.xlu0 %v1308, 111
      %v1315 = vpop.permute.xlu0 %1314
      %1316 = vrot.lane.b32.xlu0 %v1309, 111
      %v1317 = vpop.permute.xlu0 %1316
      %1318 = vrot.lane.b32.xlu0 %v1310, 111
      %v1319 = vpop.permute.xlu0 %1318
      %vm1320 = vcmask 908288
      %v1321 = vsel %vm1320, %v1315, %v1317
      %v1322 = vsel %vm1320, %v1317, %v1319
      %v1325 = vsel %vm556, %v1321, 0.0
      %v1326 = vsel %vm557, %v1322, 0.0
      %v1327 = vadd.f32 %v1227, %v1325
      %v1328 = vadd.f32 %v1228, %v1326
      %1329 = vset.pattern.permute.xlu0 33
      %1330 = vperm.xlu0 %1329, %v448
      %v1331 = vpop.permute.xlu0 %1330
      %v1333 = vmul.f32 %v1331, %v383
      %v1334 = vmul.f32 %v1331, %v384
      %v1335 = vmul.f32 %v1331, 0.0
      %1339 = vrot.lane.b32.xlu0 %v1333, 110
      %v1340 = vpop.permute.xlu0 %1339
      %1341 = vrot.lane.b32.xlu0 %v1334, 110
      %v1342 = vpop.permute.xlu0 %1341
      %1343 = vrot.lane.b32.xlu0 %v1335, 110
      %v1344 = vpop.permute.xlu0 %1343
      %vm1345 = vcmask 900096
      %v1346 = vsel %vm1345, %v1340, %v1342
      %v1347 = vsel %vm1345, %v1342, %v1344
      %v1350 = vsel %vm585, %v1346, 0.0
      %v1351 = vsel %vm586, %v1347, 0.0
      %v1352 = vadd.f32 %v1252, %v1350
      %v1353 = vadd.f32 %v1253, %v1351
      %1354 = vset.pattern.permute.xlu0 34
      %1355 = vperm.xlu0 %1354, %v448
      %v1356 = vpop.permute.xlu0 %1355
      %v1358 = vmul.f32 %v1356, %v383
      %v1359 = vmul.f32 %v1356, %v384
      %v1360 = vmul.f32 %v1356, 0.0
      %1364 = vrot.lane.b32.xlu0 %v1358, 109
      %v1365 = vpop.permute.xlu0 %1364
      %1366 = vrot.lane.b32.xlu0 %v1359, 109
      %v1367 = vpop.permute.xlu0 %1366
      %1368 = vrot.lane.b32.xlu0 %v1360, 109
      %v1369 = vpop.permute.xlu0 %1368
      %vm1370 = vcmask 891904
      %v1371 = vsel %vm1370, %v1365, %v1367
      %v1372 = vsel %vm1370, %v1367, %v1369
      %v1375 = vsel %vm614, %v1371, 0.0
      %v1376 = vsel %vm615, %v1372, 0.0
      %v1377 = vadd.f32 %v1277, %v1375
      %v1378 = vadd.f32 %v1278, %v1376
      %1379 = vset.pattern.permute.xlu0 35
      %1380 = vperm.xlu0 %1379, %v448
      %v1381 = vpop.permute.xlu0 %1380
      %v1383 = vmul.f32 %v1381, %v383
      %v1384 = vmul.f32 %v1381, %v384
      %v1385 = vmul.f32 %v1381, 0.0
      %1389 = vrot.lane.b32.xlu0 %v1383, 99
      %v1390 = vpop.permute.xlu0 %1389
      %1391 = vrot.lane.b32.xlu0 %v1384, 99
      %v1392 = vpop.permute.xlu0 %1391
      %1393 = vrot.lane.b32.xlu0 %v1385, 99
      %v1394 = vpop.permute.xlu0 %1393
      %vm1395 = vcmask 809984
      %v1396 = vsel %vm1395, %v1390, %v1392
      %v1397 = vsel %vm1395, %v1392, %v1394
      %v1400 = vsel %vm459, %v1396, 0.0
      %v1401 = vsel %vm460, %v1397, 0.0
      %1404 = vrot.lane.b32.xlu0 %v1400, 80
      %v1405 = vpop.permute.xlu0 %1404
      %1406 = vrot.lane.b32.xlu0 %v1401, 80
      %v1407 = vpop.permute.xlu0 %1406
      %v1408 = vsel %vm663, %v1405, %v1407
      %v1412 = vadd.f32 %v1301, %v1405
      %v1413 = vadd.f32 %v1302, %v1408
      %v1414 = vadd.f32 %v1303, %v1407
      %1415 = vset.pattern.permute.xlu0 36
      %1416 = vperm.xlu0 %1415, %v448
      %v1417 = vpop.permute.xlu0 %1416
      %v1419 = vmul.f32 %v1417, %v383
      %v1420 = vmul.f32 %v1417, %v384
      %v1421 = vmul.f32 %v1417, 0.0
      %1425 = vrot.lane.b32.xlu0 %v1419, 98
      %v1426 = vpop.permute.xlu0 %1425
      %1427 = vrot.lane.b32.xlu0 %v1420, 98
      %v1428 = vpop.permute.xlu0 %1427
      %1429 = vrot.lane.b32.xlu0 %v1421, 98
      %v1430 = vpop.permute.xlu0 %1429
      %vm1431 = vcmask 801792
      %v1432 = vsel %vm1431, %v1426, %v1428
      %v1433 = vsel %vm1431, %v1428, %v1430
      %v1436 = vsel %vm488, %v1432, 0.0
      %v1437 = vsel %vm489, %v1433, 0.0
      %v1438 = vadd.f32 %v1327, %v1436
      %v1439 = vadd.f32 %v1328, %v1437
      %1440 = vset.pattern.permute.xlu0 37
      %1441 = vperm.xlu0 %1440, %v448
      %v1442 = vpop.permute.xlu0 %1441
      %v1444 = vmul.f32 %v1442, %v383
      %v1445 = vmul.f32 %v1442, %v384
      %v1446 = vmul.f32 %v1442, 0.0
      %1450 = vrot.lane.b32.xlu0 %v1444, 97
      %v1451 = vpop.permute.xlu0 %1450
      %1452 = vrot.lane.b32.xlu0 %v1445, 97
      %v1453 = vpop.permute.xlu0 %1452
      %1454 = vrot.lane.b32.xlu0 %v1446, 97
      %v1455 = vpop.permute.xlu0 %1454
      %vm1456 = vcmask 793600
      %v1457 = vsel %vm1456, %v1451, %v1453
      %v1458 = vsel %vm1456, %v1453, %v1455
      %v1461 = vsel %vm517, %v1457, 0.0
      %v1462 = vsel %vm518, %v1458, 0.0
      %v1463 = vadd.f32 %v1352, %v1461
      %v1464 = vadd.f32 %v1353, %v1462
      %1465 = vset.pattern.permute.xlu0 38
      %1466 = vperm.xlu0 %1465, %v448
      %v1467 = vpop.permute.xlu0 %1466
      %v1469 = vmul.f32 %v1467, %v383
      %v1470 = vmul.f32 %v1467, %v384
      %v1471 = vmul.f32 %v1467, 0.0
      %1475 = vrot.lane.b32.xlu0 %v1469, 96
      %v1476 = vpop.permute.xlu0 %1475
      %1477 = vrot.lane.b32.xlu0 %v1470, 96
      %v1478 = vpop.permute.xlu0 %1477
      %1479 = vrot.lane.b32.xlu0 %v1471, 96
      %v1480 = vpop.permute.xlu0 %1479
      %vm1481 = vcmask 785408
      %v1482 = vsel %vm1481, %v1476, %v1478
      %v1483 = vsel %vm1481, %v1478, %v1480
      %v1486 = vadd.f32 %v1377, %v1482
      %v1487 = vadd.f32 %v1378, %v1483
      %1488 = vset.pattern.permute.xlu0 39
      %1489 = vperm.xlu0 %1488, %v448
      %v1490 = vpop.permute.xlu0 %1489
      %v1492 = vmul.f32 %v1490, %v383
      %v1493 = vmul.f32 %v1490, %v384
      %v1494 = vmul.f32 %v1490, 0.0
      %1498 = vrot.lane.b32.xlu0 %v1492, 95
      %v1499 = vpop.permute.xlu0 %1498
      %1500 = vrot.lane.b32.xlu0 %v1493, 95
      %v1501 = vpop.permute.xlu0 %1500
      %1502 = vrot.lane.b32.xlu0 %v1494, 95
      %v1503 = vpop.permute.xlu0 %1502
      %vm1504 = vcmask 777216
      %v1505 = vsel %vm1504, %v1499, %v1501
      %v1506 = vsel %vm1504, %v1501, %v1503
      %v1509 = vsel %vm556, %v1505, 0.0
      %v1510 = vsel %vm557, %v1506, 0.0
      %1513 = vrot.lane.b32.xlu0 %v1509, 80
      %v1514 = vpop.permute.xlu0 %1513
      %1515 = vrot.lane.b32.xlu0 %v1510, 80
      %v1516 = vpop.permute.xlu0 %1515
      %v1517 = vsel %vm663, %v1514, %v1516
      %v1521 = vadd.f32 %v1412, %v1514
      %v1522 = vadd.f32 %v1413, %v1517
      %v1523 = vadd.f32 %v1414, %v1516
      %1524 = vset.pattern.permute.xlu0 40
      %1525 = vperm.xlu0 %1524, %v448
      %v1526 = vpop.permute.xlu0 %1525
      %v1528 = vmul.f32 %v1526, %v383
      %v1529 = vmul.f32 %v1526, %v384
      %v1530 = vmul.f32 %v1526, 0.0
      %1534 = vrot.lane.b32.xlu0 %v1528, 94
      %v1535 = vpop.permute.xlu0 %1534
      %1536 = vrot.lane.b32.xlu0 %v1529, 94
      %v1537 = vpop.permute.xlu0 %1536
      %1538 = vrot.lane.b32.xlu0 %v1530, 94
      %v1539 = vpop.permute.xlu0 %1538
      %vm1540 = vcmask 769024
      %v1541 = vsel %vm1540, %v1535, %v1537
      %v1542 = vsel %vm1540, %v1537, %v1539
      %v1545 = vsel %vm585, %v1541, 0.0
      %v1546 = vsel %vm586, %v1542, 0.0
      %v1547 = vadd.f32 %v1438, %v1545
      %v1548 = vadd.f32 %v1439, %v1546
      %1549 = vset.pattern.permute.xlu0 41
      %1550 = vperm.xlu0 %1549, %v448
      %v1551 = vpop.permute.xlu0 %1550
      %v1553 = vmul.f32 %v1551, %v383
      %v1554 = vmul.f32 %v1551, %v384
      %v1555 = vmul.f32 %v1551, 0.0
      %1559 = vrot.lane.b32.xlu0 %v1553, 93
      %v1560 = vpop.permute.xlu0 %1559
      %1561 = vrot.lane.b32.xlu0 %v1554, 93
      %v1562 = vpop.permute.xlu0 %1561
      %1563 = vrot.lane.b32.xlu0 %v1555, 93
      %v1564 = vpop.permute.xlu0 %1563
      %vm1565 = vcmask 760832
      %v1566 = vsel %vm1565, %v1560, %v1562
      %v1567 = vsel %vm1565, %v1562, %v1564
      %v1570 = vsel %vm614, %v1566, 0.0
      %v1571 = vsel %vm615, %v1567, 0.0
      %v1572 = vadd.f32 %v1463, %v1570
      %v1573 = vadd.f32 %v1464, %v1571
      %1574 = vset.pattern.permute.xlu0 42
      %1575 = vperm.xlu0 %1574, %v448
      %v1576 = vpop.permute.xlu0 %1575
      %v1578 = vmul.f32 %v1576, %v383
      %v1579 = vmul.f32 %v1576, %v384
      %v1580 = vmul.f32 %v1576, 0.0
      %1584 = vrot.lane.b32.xlu0 %v1578, 83
      %v1585 = vpop.permute.xlu0 %1584
      %1586 = vrot.lane.b32.xlu0 %v1579, 83
      %v1587 = vpop.permute.xlu0 %1586
      %1588 = vrot.lane.b32.xlu0 %v1580, 83
      %v1589 = vpop.permute.xlu0 %1588
      %vm1590 = vcmask 678912
      %v1591 = vsel %vm1590, %v1585, %v1587
      %v1592 = vsel %vm1590, %v1587, %v1589
      %v1595 = vsel %vm459, %v1591, 0.0
      %v1596 = vsel %vm460, %v1592, 0.0
      %v1597 = vadd.f32 %v1486, %v1595
      %v1598 = vadd.f32 %v1487, %v1596
      %1599 = vset.pattern.permute.xlu0 43
      %1600 = vperm.xlu0 %1599, %v448
      %v1601 = vpop.permute.xlu0 %1600
      %v1603 = vmul.f32 %v1601, %v383
      %v1604 = vmul.f32 %v1601, %v384
      %v1605 = vmul.f32 %v1601, 0.0
      %1609 = vrot.lane.b32.xlu0 %v1603, 82
      %v1610 = vpop.permute.xlu0 %1609
      %1611 = vrot.lane.b32.xlu0 %v1604, 82
      %v1612 = vpop.permute.xlu0 %1611
      %1613 = vrot.lane.b32.xlu0 %v1605, 82
      %v1614 = vpop.permute.xlu0 %1613
      %vm1615 = vcmask 670720
      %v1616 = vsel %vm1615, %v1610, %v1612
      %v1617 = vsel %vm1615, %v1612, %v1614
      %v1620 = vsel %vm488, %v1616, 0.0
      %v1621 = vsel %vm489, %v1617, 0.0
      %1624 = vrot.lane.b32.xlu0 %v1620, 80
      %v1625 = vpop.permute.xlu0 %1624
      %1626 = vrot.lane.b32.xlu0 %v1621, 80
      %v1627 = vpop.permute.xlu0 %1626
      %v1628 = vsel %vm663, %v1625, %v1627
      %v1632 = vadd.f32 %v1521, %v1625
      %v1633 = vadd.f32 %v1522, %v1628
      %v1634 = vadd.f32 %v1523, %v1627
      %1635 = vset.pattern.permute.xlu0 44
      %1636 = vperm.xlu0 %1635, %v448
      %v1637 = vpop.permute.xlu0 %1636
      %v1639 = vmul.f32 %v1637, %v383
      %v1640 = vmul.f32 %v1637, %v384
      %v1641 = vmul.f32 %v1637, 0.0
      %1645 = vrot.lane.b32.xlu0 %v1639, 81
      %v1646 = vpop.permute.xlu0 %1645
      %1647 = vrot.lane.b32.xlu0 %v1640, 81
      %v1648 = vpop.permute.xlu0 %1647
      %1649 = vrot.lane.b32.xlu0 %v1641, 81
      %v1650 = vpop.permute.xlu0 %1649
      %vm1651 = vcmask 662528
      %v1652 = vsel %vm1651, %v1646, %v1648
      %v1653 = vsel %vm1651, %v1648, %v1650
      %v1656 = vsel %vm517, %v1652, 0.0
      %v1657 = vsel %vm518, %v1653, 0.0
      %v1658 = vadd.f32 %v1547, %v1656
      %v1659 = vadd.f32 %v1548, %v1657
      %1660 = vset.pattern.permute.xlu0 45
      %1661 = vperm.xlu0 %1660, %v448
      %v1662 = vpop.permute.xlu0 %1661
      %v1664 = vmul.f32 %v1662, %v383
      %v1665 = vmul.f32 %v1662, %v384
      %v1666 = vmul.f32 %v1662, 0.0
      %1670 = vrot.lane.b32.xlu0 %v1664, 80
      %v1671 = vpop.permute.xlu0 %1670
      %1672 = vrot.lane.b32.xlu0 %v1665, 80
      %v1673 = vpop.permute.xlu0 %1672
      %1674 = vrot.lane.b32.xlu0 %v1666, 80
      %v1675 = vpop.permute.xlu0 %1674
      %v1676 = vsel %vm663, %v1671, %v1673
      %v1677 = vsel %vm663, %v1673, %v1675
      %v1680 = vadd.f32 %v1572, %v1676
      %v1681 = vadd.f32 %v1573, %v1677
      %1682 = vset.pattern.permute.xlu0 46
      %1683 = vperm.xlu0 %1682, %v448
      %v1684 = vpop.permute.xlu0 %1683
      %v1686 = vmul.f32 %v1684, %v383
      %v1687 = vmul.f32 %v1684, %v384
      %v1688 = vmul.f32 %v1684, 0.0
      %1692 = vrot.lane.b32.xlu0 %v1686, 79
      %v1693 = vpop.permute.xlu0 %1692
      %1694 = vrot.lane.b32.xlu0 %v1687, 79
      %v1695 = vpop.permute.xlu0 %1694
      %1696 = vrot.lane.b32.xlu0 %v1688, 79
      %v1697 = vpop.permute.xlu0 %1696
      %vm1698 = vcmask 646144
      %v1699 = vsel %vm1698, %v1693, %v1695
      %v1700 = vsel %vm1698, %v1695, %v1697
      %v1703 = vsel %vm556, %v1699, 0.0
      %v1704 = vsel %vm557, %v1700, 0.0
      %v1705 = vadd.f32 %v1597, %v1703
      %v1706 = vadd.f32 %v1598, %v1704
      %1707 = vset.pattern.permute.xlu0 47
      %1708 = vperm.xlu0 %1707, %v448
      %v1709 = vpop.permute.xlu0 %1708
      %v1711 = vmul.f32 %v1709, %v383
      %v1712 = vmul.f32 %v1709, %v384
      %v1713 = vmul.f32 %v1709, 0.0
      %1717 = vrot.lane.b32.xlu0 %v1711, 78
      %v1718 = vpop.permute.xlu0 %1717
      %1719 = vrot.lane.b32.xlu0 %v1712, 78
      %v1720 = vpop.permute.xlu0 %1719
      %1721 = vrot.lane.b32.xlu0 %v1713, 78
      %v1722 = vpop.permute.xlu0 %1721
      %vm1723 = vcmask 637952
      %v1724 = vsel %vm1723, %v1718, %v1720
      %v1725 = vsel %vm1723, %v1720, %v1722
      %v1728 = vsel %vm585, %v1724, 0.0
      %v1729 = vsel %vm586, %v1725, 0.0
      %1732 = vrot.lane.b32.xlu0 %v1728, 80
      %v1733 = vpop.permute.xlu0 %1732
      %1734 = vrot.lane.b32.xlu0 %v1729, 80
      %v1735 = vpop.permute.xlu0 %1734
      %v1736 = vsel %vm663, %v1733, %v1735
      %v1740 = vadd.f32 %v1632, %v1733
      %v1741 = vadd.f32 %v1633, %v1736
      %v1742 = vadd.f32 %v1634, %v1735
      %1743 = vset.pattern.permute.xlu0 48
      %1744 = vperm.xlu0 %1743, %v448
      %v1745 = vpop.permute.xlu0 %1744
      %v1747 = vmul.f32 %v1745, %v383
      %v1748 = vmul.f32 %v1745, %v384
      %v1749 = vmul.f32 %v1745, 0.0
      %1753 = vrot.lane.b32.xlu0 %v1747, 77
      %v1754 = vpop.permute.xlu0 %1753
      %1755 = vrot.lane.b32.xlu0 %v1748, 77
      %v1756 = vpop.permute.xlu0 %1755
      %1757 = vrot.lane.b32.xlu0 %v1749, 77
      %v1758 = vpop.permute.xlu0 %1757
      %vm1759 = vcmask 629760
      %v1760 = vsel %vm1759, %v1754, %v1756
      %v1761 = vsel %vm1759, %v1756, %v1758
      %v1764 = vsel %vm614, %v1760, 0.0
      %v1765 = vsel %vm615, %v1761, 0.0
      %v1766 = vadd.f32 %v1658, %v1764
      %v1767 = vadd.f32 %v1659, %v1765
      %v1768 = vadd.f32 %v1766, %v1680
      %v1769 = vadd.f32 %v1767, %v1681
      %1773 = vrot.lane.b32.xlu0 %v1740, 48
      %v1774 = vpop.permute.xlu0 %1773
      %1775 = vrot.lane.b32.xlu0 %v1741, 48
      %v1776 = vpop.permute.xlu0 %1775
      %1777 = vrot.lane.b32.xlu0 %v1742, 48
      %v1778 = vpop.permute.xlu0 %1777
      %vm1779 = vcmask 392192
      %v1780 = vsel %vm1779, %v1774, %v1776
      %v1781 = vsel %vm1779, %v1776, %v1778
      %v1784 = vadd.f32 %v1705, %v1780
      %v1785 = vadd.f32 %v1706, %v1781
      %v1786 = vadd.f32 %v1768, %v1784
      %v1787 = vadd.f32 %v1769, %v1785
      %v1790 = vrot.slane %v1786, 1
      %v1791 = vrot.slane %v1787, 1
      %v1794 = vadd.f32 %v1786, %v1790
      %v1795 = vadd.f32 %v1787, %v1791
      %v1796 = vxor.u32 %v1794, 2147483648
      %v1797 = vxor.u32 %v1795, 2147483648
      %v1798 = vmul.f32 %v1796, 1.442695
      %v1799 = vpow.pop %v1798
      %v1800 = vmul.f32 %v1797, 1.442695
      %v1801 = vpow.pop %v1800
      %v1802 = vadd.f32 %v1799, 1.0
      %v1803 = vadd.f32 %v1801, 1.0
      %v1804 = vrcp.pop %v1802
      %v1805 = vmul.f32 1.0, %v1804
      %v1806 = vrcp.pop %v1803
      %v1807 = vmul.f32 1.0, %v1806
      %v1808 = vlaneseq
      %v1809 = vshrl.u32 %v1808, 7
      %v1810 = vsub.s32 0, %v1809
      %v1811 = vrot.slane %v1805, %v1810
      %v1812 = vlaneseq
      %v1813 = vshrl.u32 %v1812, 7
      %v1814 = vsub.s32 0, %v1813
      %v1815 = vrot.slane %v1807, %v1814
      %v1816 = vmul.f32 %v336, %v1811
      %v1817 = vmul.f32 %v337, %v1815
      %v1818 = vmul.f32 %v338, %v1811
      %v1819 = vmul.f32 %v339, %v1815
      %v1820 = vmul.f32 %v340, %v1811
      %v1821 = vmul.f32 %v341, %v1815
      %v1822 = vmul.f32 %v342, %v1811
      %v1823 = vmul.f32 %v343, %v1815
      %1824 = vst [vmem:[%s197] sm:$0xff] %v1816
      %1825 = vst [vmem:[%s197 + $0x8] sm:$0xff] %v1817
      %1826 = vst [vmem:[%s197 + $0x10] sm:$0xff] %v1818
      %1827 = vst [vmem:[%s197 + $0x18] sm:$0xff] %v1819
      %1828 = vst [vmem:[%s197 + $0x20] sm:$0xff] %v1820
      %1829 = vst [vmem:[%s197 + $0x28] sm:$0xff] %v1821
      %1830 = vst [vmem:[%s197 + $0x30] sm:$0xff] %v1822
      %1831 = vst [vmem:[%s197 + $0x38] sm:$0xff] %v1823
      %p1832 = scmp.lt.s32.totalorder %s15, 1
      %s1833 = scalar_select %p1832, %s15, 1
      %s1834 = smul.addr %s1833, 8
      %s1835 = smul.addr %s1834, 8
      %s1836 = scalar_lea.vmem %s4, %s1835
      // Predicated region
      $region37: #{cbam_forward.1} parent=35 // pred_check
        %p1837 = pneg %p122
      $region38: #{cbam_forward.1} parent=35 // pred_check_branch
        %1839 = sbr.rel (%p1837) target = $region40
      $region39: #{cbam_forward.1} parent=35 // pred_region
        _
      $region40: #{cbam_forward.1} parent=35 // pred_fallthru
        _
    $region36: #{cbam_forward.1} parent=5 // pred_fallthru
      _
    %p1840 = scmp.le.s32.totalorder 2, %s10
    // Predicated region
    $region41: #{cbam_forward.1} parent=5 // pred_check
      %p1841 = pneg %p1840
    $region42: #{cbam_forward.1} parent=5 // pred_check_branch
      %1843 = sbr.rel (%p1841) target = $region44
    $region43: #{cbam_forward.1} parent=5 // pred_region
      %s1844 = ssub.s32 %s10, 2
      // Predicated region
      $region45: #{cbam_forward.1} parent=43 // pred_check
        %p1845 = pneg %p128
      $region46: #{cbam_forward.1} parent=43 // pred_check_branch
        %1847 = sbr.rel (%p1845) target = $region48
      $region47: #{cbam_forward.1} parent=43 // pred_region
        %p1848 = scmp.lt.s32.totalorder %s16, 1
        %s1849 = scalar_select %p1848, %s16, 1
        %s1850 = smul.addr %s1849, 8
        %s1851 = smul.addr %s1850, 8
        %s1852 = scalar_lea.vmem %s4, %s1851
      $region48: #{cbam_forward.1} parent=43 // pred_fallthru
        _
    $region44: #{cbam_forward.1} parent=5 // pred_fallthru
      _
  $region6: #{cbam_forward.1} parent=0 // loop_footer
    %s14 = sadd.s32 1, %s10
  $region7: #{cbam_forward.1} parent=0 // loop_footer_branch
    %9 = sbr.rel target = $region3
  $region8: #{cbam_forward.1} parent=0 // loop_exit
    _

</llo_original>
